<compile_context>
chip_gen: v7x
topology: tpu7x:2x2x1
jax: 0.10.0
libtpu: 0.0.40
codegen_flags: <defaults>
</compile_context>

<pallas_src>
import functools

import jax
import jax.numpy as jnp
from jax import lax
from jax.experimental import pallas as pl
from jax.experimental.pallas import tpu as pltpu


def _recurrent_kernel(gx_ref, whh_ref, out_ref, h_scr, c_scr, *,
                      hidden, seq_len, t_chunk):
    """One grid step = one (M tile, time chunk). h/c persist in VMEM scratch."""
    chunk = pl.program_id(1)

    @pl.when(chunk == 0)
    def _():
        h_scr[...] = jnp.zeros_like(h_scr)
        c_scr[...] = jnp.zeros_like(c_scr)

    whh = whh_ref[...]                       # [H, 4H] f32, hoisted out of the loop
    needs_mask = (seq_len % t_chunk) != 0    # static Python bool

    def step(s, carry):
        def do_step():
            # Gate pre-activations: x-side contribution was precomputed, so the
            # serial critical path is just the tiny recurrent matmul + gates.
            g = gx_ref[s] + jnp.dot(h_scr[...], whh,
                                    preferred_element_type=jnp.float32)
            i_g = jax.nn.sigmoid(g[:, 0 * hidden:1 * hidden])
            f_g = jax.nn.sigmoid(g[:, 1 * hidden:2 * hidden])
            g_g = jnp.tanh(g[:, 2 * hidden:3 * hidden])
            o_g = jax.nn.sigmoid(g[:, 3 * hidden:4 * hidden])
            c_new = f_g * c_scr[...] + i_g * g_g
            c_scr[...] = c_new
            h_scr[...] = o_g * jnp.tanh(c_new)

        if needs_mask:
            # Padded timesteps (time axis rounded up to a multiple of Tc) are
            # skipped so the recurrent state is never polluted.
            pl.when(chunk * t_chunk + s < seq_len)(do_step)
        else:
            do_step()
        return carry

    lax.fori_loop(0, t_chunk, step, 0, unroll=True)

    @pl.when(chunk == pl.num_programs(1) - 1)
    def _():
        out_ref[...] = h_scr[...].astype(out_ref.dtype)


def prepare_encoder_params(params):
    """One-time hoisted preprocessing: fold fc_emb into the LSTM input weights.

    gates_x = (x @ W_e^T + b_e) @ W_ih^T + b_ih + b_hh
            =  x @ (W_e^T @ W_ih^T) + (b_e @ W_ih^T + b_ih + b_hh)
    """
    f32 = jnp.float32
    wih_t = params["weight_ih"].T.astype(f32)                 # [2E, 4H]
    w_x = params["emb_weight"].T.astype(f32) @ wih_t          # [n_in, 4H] folded
    b_comb = (params["emb_bias"].astype(f32) @ wih_t
              + params["bias_ih"].astype(f32)
              + params["bias_hh"].astype(f32)).reshape(1, -1)  # [1, 4H]
    return {
        "w_x": w_x,
        "b_comb": b_comb,
        "whh_t": params["weight_hh"].T.astype(f32),            # [H, 4H]
        "n_hid": int(params["weight_hh"].shape[1]),
    }


def _round_up(x, m):
    return ((x + m - 1) // m) * m


def lstm_encoder_pallas(inputs, prep, *, tm_target=128, tc_target=32):
    """inputs: [B, A, T, n_in] float32. Returns final hidden state [B, A, n_hid]."""
    B, A, T, F = inputs.shape
    M = B * A
    H = int(prep["n_hid"])
    G = 4 * H

    # ---- x-side gate contribution, hoisted out of the recurrence ----------
    # One big matmul over all timesteps (fully parallel, MXU-efficient) instead
    # of T tiny K=6 matmuls on the serial recurrent path.
    x = jnp.transpose(inputs, (2, 0, 1, 3)).reshape(T * M, F).astype(jnp.float32)
    gates_x = (jnp.dot(x, prep["w_x"]) + prep["b_comb"]).reshape(T, M, G)

    # ---- tiling ------------------------------------------------------------
    # tm <= 128 (multiple of 8) keeps the [tm, 4H] f32 gate tensor close to
    # register-resident; take >=2 M tiles whenever M allows so both v7x
    # TensorCores get work on the "parallel" axis.
    tm = min(tm_target, _round_up(max((M + 1) // 2, 8), 8))
    M_pad = _round_up(M, tm)
    Tc = min(tc_target, T)
    T_pad = _round_up(T, Tc)
    if (M_pad, T_pad) != (M, T):
        gates_x = jnp.pad(gates_x, ((0, T_pad - T), (0, M_pad - M), (0, 0)))
    num_m = M_pad // tm
    num_c = T_pad // Tc

    kernel = functools.partial(_recurrent_kernel, hidden=H, seq_len=T, t_chunk=Tc)

    out = pl.pallas_call(
        kernel,
        out_shape=jax.ShapeDtypeStruct((M_pad, H), jnp.float32),
        grid=(num_m, num_c),                                   # time innermost
        in_specs=[
            # Lane-dense (Tc, tm, 4H) chunks of precomputed gate inputs.
            pl.BlockSpec((Tc, tm, G), lambda i, c: (c, i, 0)),
            # Recurrent weights stay VMEM-resident across all grid steps.
            pl.BlockSpec((H, G), lambda i, c: (0, 0)),
        ],
        # Same output block across the time axis -> resident, written once at
        # the last chunk.
        out_specs=pl.BlockSpec((tm, H), lambda i, c: (i, 0)),
        scratch_shapes=[pltpu.VMEM((tm, H), jnp.float32),      # h carry
                        pltpu.VMEM((tm, H), jnp.float32)],     # c carry
        compiler_params=pltpu.CompilerParams(
            dimension_semantics=("parallel", "arbitrary")),
    )(gates_x, prep["whh_t"])

    return out[:M].reshape(B, A, H)


def init_encoder_params(key, n_in, n_emb=16, n_h=32):
    """Deterministic init matching nn.Linear / nn.LSTMCell U(-k, k)."""
    ke, kl = jax.random.split(key)
    k_lin = 1.0 / jnp.sqrt(jnp.float32(n_in))
    k_lstm = 1.0 / jnp.sqrt(jnp.float32(n_h))
    ke = jax.random.split(ke, 2)
    kl = jax.random.split(kl, 4)
    two_e = 2 * n_emb
    return {
        "emb_weight": jax.random.uniform(ke[0], (two_e, n_in), jnp.float32,
                                         -k_lin, k_lin),
        "emb_bias": jax.random.uniform(ke[1], (two_e,), jnp.float32,
                                       -k_lin, k_lin),
        "weight_ih": jax.random.uniform(kl[0], (4 * n_h, two_e), jnp.float32,
                                        -k_lstm, k_lstm),
        "weight_hh": jax.random.uniform(kl[1], (4 * n_h, n_h), jnp.float32,
                                        -k_lstm, k_lstm),
        "bias_ih": jax.random.uniform(kl[2], (4 * n_h,), jnp.float32,
                                      -k_lstm, k_lstm),
        "bias_hh": jax.random.uniform(kl[3], (4 * n_h,), jnp.float32,
                                      -k_lstm, k_lstm),
    }


def _lstm_encoder_ref(inputs, params):
    """Pure f32 JAX reference matching the PyTorch module (unfolded fc_emb)."""
    B, A, T, F = inputs.shape
    M = B * A
    H = int(params["weight_hh"].shape[1])
    we, be = params["emb_weight"], params["emb_bias"]
    wih, whh = params["weight_ih"], params["weight_hh"]
    b = params["bias_ih"] + params["bias_hh"]
    h = jnp.zeros((M, H), jnp.float32)
    c = jnp.zeros((M, H), jnp.float32)
    for t in range(T):
        x_t = inputs[:, :, t, :].reshape(M, F)
        emb = x_t @ we.T + be
        gates = emb @ wih.T + h @ whh.T + b
        i = jax.nn.sigmoid(gates[:, 0 * H:1 * H])
        f = jax.nn.sigmoid(gates[:, 1 * H:2 * H])
        g = jnp.tanh(gates[:, 2 * H:3 * H])
        o = jax.nn.sigmoid(gates[:, 3 * H:4 * H])
        c = f * c + i * g
        h = o * jnp.tanh(c)
    return h.reshape(B, A, H)


if __name__ == "__main__":
    key = jax.random.PRNGKey(0)
    k_in, k_param = jax.random.split(key)

    batch, num_atoms, timesteps, n_in = 2, 4, 8, 6
    n_emb, n_hid = 16, 32

    inputs = jax.random.normal(k_in, (batch, num_atoms, timesteps, n_in),
                               jnp.float32)
    params = init_encoder_params(k_param, n_in, n_emb, n_hid)
    prep = prepare_encoder_params(params)     # hoisted one-time preprocessing

    out = lstm_encoder_pallas(inputs, prep)
    out = jax.block_until_ready(out)

    ref = _lstm_encoder_ref(inputs, params)   # true f32 reference (not matched
                                              # to kernel rounding)
    assert out.shape == (batch, num_atoms, n_hid)
    max_err = float(jnp.max(jnp.abs(out - ref)))
    # Tolerance covers TPU default (bf16-pass) matmul precision differences
    # between the folded kernel path and the unfolded f32 reference.
    assert jnp.allclose(out, ref, atol=5e-3, rtol=5e-3), max_err
    print("KERNEL_OK")
</pallas_src>

<mosaic_0001>
module attributes {stable_mosaic.version = 11 : i64} {
  func.func @_recurrent_kernel(%arg0: i32, %arg1: i32, %arg2: memref<8x8x128xf32, #tpu.memory_space<vmem>>, %arg3: memref<32x128xf32, #tpu.memory_space<vmem>>, %arg4: memref<8x32xf32, #tpu.memory_space<vmem>>, %arg5: memref<8x32xf32, #tpu.memory_space<vmem>>, %arg6: memref<8x32xf32, #tpu.memory_space<vmem>>) attributes {dimension_semantics = [#tpu.dimension_semantics<parallel>, #tpu.dimension_semantics<arbitrary>], iteration_bounds = array<i64: 1, 1>, scalar_prefetch = 0 : i64, scratch_operands = 2 : i64, tpu.core_type = #tpu.core_type<tc>, window_params = [{transform_indices = @transform_0, window_bounds = array<i64: 8, 8, 128>}, {pipeline_mode = #tpu.pipeline_mode<synchronous>, transform_indices = @transform_1, window_bounds = array<i64: 32, 128>}, {transform_indices = @transform_2, window_bounds = array<i64: 8, 32>}]} {
    %c0_i32 = arith.constant 0 : i32
    %0 = arith.cmpi eq, %arg1, %c0_i32 : i32
    %1 = arith.extui %0 : i1 to i32
    %c0_i32_0 = arith.constant 0 : i32
    %2 = arith.cmpi ne, %1, %c0_i32_0 : i32
    scf.if %2 {
      %cst_116 = arith.constant 0.000000e+00 : f32
      %279 = vector.broadcast %cst_116 : f32 to vector<8x32xf32>
      %c0_117 = arith.constant 0 : index
      %c0_118 = arith.constant 0 : index
      %280 = vector.load %arg5[%c0_117, %c0_118] : memref<8x32xf32, #tpu.memory_space<vmem>>, vector<8x32xf32>
      tpu.vector_store %arg5[%c0_117, %c0_118], %279 {strides = array<i32>} : memref<8x32xf32, #tpu.memory_space<vmem>>, vector<8x32xf32>,
      %cst_119 = arith.constant 0.000000e+00 : f32
      %281 = vector.broadcast %cst_119 : f32 to vector<8x32xf32>
      %c0_120 = arith.constant 0 : index
      %c0_121 = arith.constant 0 : index
      %282 = vector.load %arg6[%c0_120, %c0_121] : memref<8x32xf32, #tpu.memory_space<vmem>>, vector<8x32xf32>
      tpu.vector_store %arg6[%c0_120, %c0_121], %281 {strides = array<i32>} : memref<8x32xf32, #tpu.memory_space<vmem>>, vector<8x32xf32>,
    } else {
    }
    %c0 = arith.constant 0 : index
    %c0_1 = arith.constant 0 : index
    %3 = vector.load %arg3[%c0, %c0_1] : memref<32x128xf32, #tpu.memory_space<vmem>>, vector<32x128xf32>
    %c0_i32_2 = arith.constant 0 : i32
    %4 = arith.index_cast %c0_i32_2 : i32 to index
    %c0_3 = arith.constant 0 : index
    %c0_4 = arith.constant 0 : index
    %5 = vector.load %arg2[%4, %c0_3, %c0_4] : memref<8x8x128xf32, #tpu.memory_space<vmem>>, vector<1x8x128xf32>
    %6 = vector.shape_cast %5 : vector<1x8x128xf32> to vector<8x128xf32>
    %c0_5 = arith.constant 0 : index
    %c0_6 = arith.constant 0 : index
    %7 = vector.load %arg5[%c0_5, %c0_6] : memref<8x32xf32, #tpu.memory_space<vmem>>, vector<8x32xf32>
    %cst = arith.constant dense<0.000000e+00> : vector<8x128xf32>
    %8 = tpu.matmul %7, %3, %cst {dimension_numbers = #tpu.dot_dimension_numbers<[1], [0], [0], [1], [0, 0, 1, 1], [], []>} : vector<8x32xf32>, vector<32x128xf32>, vector<8x128xf32> -> vector<8x128xf32>
    %9 = arith.addf %6, %8 : vector<8x128xf32>
    %10 = vector.extract_strided_slice %9 {offsets = [0, 0], sizes = [8, 32], strides = [1, 1]} : vector<8x128xf32> to vector<8x32xf32>
    %11 = arith.negf %10 : vector<8x32xf32>
    %12 = math.exp %11 : vector<8x32xf32>
    %cst_7 = arith.constant 1.000000e+00 : f32
    %13 = vector.broadcast %cst_7 : f32 to vector<8x32xf32>
    %14 = arith.addf %13, %12 : vector<8x32xf32>
    %15 = arith.divf %13, %14 : vector<8x32xf32>
    %16 = vector.extract_strided_slice %9 {offsets = [0, 32], sizes = [8, 32], strides = [1, 1]} : vector<8x128xf32> to vector<8x32xf32>
    %17 = arith.negf %16 : vector<8x32xf32>
    %18 = math.exp %17 : vector<8x32xf32>
    %cst_8 = arith.constant 1.000000e+00 : f32
    %19 = vector.broadcast %cst_8 : f32 to vector<8x32xf32>
    %20 = arith.addf %19, %18 : vector<8x32xf32>
    %21 = arith.divf %19, %20 : vector<8x32xf32>
    %22 = vector.extract_strided_slice %9 {offsets = [0, 64], sizes = [8, 32], strides = [1, 1]} : vector<8x128xf32> to vector<8x32xf32>
    %23 = math.tanh %22 : vector<8x32xf32>
    %24 = vector.extract_strided_slice %9 {offsets = [0, 96], sizes = [8, 32], strides = [1, 1]} : vector<8x128xf32> to vector<8x32xf32>
    %25 = arith.negf %24 : vector<8x32xf32>
    %26 = math.exp %25 : vector<8x32xf32>
    %cst_9 = arith.constant 1.000000e+00 : f32
    %27 = vector.broadcast %cst_9 : f32 to vector<8x32xf32>
    %28 = arith.addf %27, %26 : vector<8x32xf32>
    %29 = arith.divf %27, %28 : vector<8x32xf32>
    %c0_10 = arith.constant 0 : index
    %c0_11 = arith.constant 0 : index
    %30 = vector.load %arg6[%c0_10, %c0_11] : memref<8x32xf32, #tpu.memory_space<vmem>>, vector<8x32xf32>
    %31 = arith.mulf %21, %30 : vector<8x32xf32>
    %32 = arith.mulf %15, %23 : vector<8x32xf32>
    %33 = arith.addf %31, %32 : vector<8x32xf32>
    %c0_12 = arith.constant 0 : index
    %c0_13 = arith.constant 0 : index
    %34 = vector.load %arg6[%c0_12, %c0_13] : memref<8x32xf32, #tpu.memory_space<vmem>>, vector<8x32xf32>
    tpu.vector_store %arg6[%c0_12, %c0_13], %33 {strides = array<i32>} : memref<8x32xf32, #tpu.memory_space<vmem>>, vector<8x32xf32>,
    %35 = math.tanh %33 : vector<8x32xf32>
    %36 = arith.mulf %29, %35 : vector<8x32xf32>
    %c0_14 = arith.constant 0 : index
    %c0_15 = arith.constant 0 : index
    %37 = vector.load %arg5[%c0_14, %c0_15] : memref<8x32xf32, #tpu.memory_space<vmem>>, vector<8x32xf32>
    tpu.vector_store %arg5[%c0_14, %c0_15], %36 {strides = array<i32>} : memref<8x32xf32, #tpu.memory_space<vmem>>, vector<8x32xf32>,
    %c1_i32 = arith.constant 1 : i32
    %38 = arith.index_cast %c1_i32 : i32 to index
    %c0_16 = arith.constant 0 : index
    %c0_17 = arith.constant 0 : index
    %39 = vector.load %arg2[%38, %c0_16, %c0_17] : memref<8x8x128xf32, #tpu.memory_space<vmem>>, vector<1x8x128xf32>
    %40 = vector.shape_cast %39 : vector<1x8x128xf32> to vector<8x128xf32>
    %c0_18 = arith.constant 0 : index
    %c0_19 = arith.constant 0 : index
    %41 = vector.load %arg5[%c0_18, %c0_19] : memref<8x32xf32, #tpu.memory_space<vmem>>, vector<8x32xf32>
    %cst_20 = arith.constant dense<0.000000e+00> : vector<8x128xf32>
    %42 = tpu.matmul %41, %3, %cst_20 {dimension_numbers = #tpu.dot_dimension_numbers<[1], [0], [0], [1], [0, 0, 1, 1], [], []>} : vector<8x32xf32>, vector<32x128xf32>, vector<8x128xf32> -> vector<8x128xf32>
    %43 = arith.addf %40, %42 : vector<8x128xf32>
    %44 = vector.extract_strided_slice %43 {offsets = [0, 0], sizes = [8, 32], strides = [1, 1]} : vector<8x128xf32> to vector<8x32xf32>
    %45 = arith.negf %44 : vector<8x32xf32>
    %46 = math.exp %45 : vector<8x32xf32>
    %cst_21 = arith.constant 1.000000e+00 : f32
    %47 = vector.broadcast %cst_21 : f32 to vector<8x32xf32>
    %48 = arith.addf %47, %46 : vector<8x32xf32>
    %49 = arith.divf %47, %48 : vector<8x32xf32>
    %50 = vector.extract_strided_slice %43 {offsets = [0, 32], sizes = [8, 32], strides = [1, 1]} : vector<8x128xf32> to vector<8x32xf32>
    %51 = arith.negf %50 : vector<8x32xf32>
    %52 = math.exp %51 : vector<8x32xf32>
    %cst_22 = arith.constant 1.000000e+00 : f32
    %53 = vector.broadcast %cst_22 : f32 to vector<8x32xf32>
    %54 = arith.addf %53, %52 : vector<8x32xf32>
    %55 = arith.divf %53, %54 : vector<8x32xf32>
    %56 = vector.extract_strided_slice %43 {offsets = [0, 64], sizes = [8, 32], strides = [1, 1]} : vector<8x128xf32> to vector<8x32xf32>
    %57 = math.tanh %56 : vector<8x32xf32>
    %58 = vector.extract_strided_slice %43 {offsets = [0, 96], sizes = [8, 32], strides = [1, 1]} : vector<8x128xf32> to vector<8x32xf32>
    %59 = arith.negf %58 : vector<8x32xf32>
    %60 = math.exp %59 : vector<8x32xf32>
    %cst_23 = arith.constant 1.000000e+00 : f32
    %61 = vector.broadcast %cst_23 : f32 to vector<8x32xf32>
    %62 = arith.addf %61, %60 : vector<8x32xf32>
    %63 = arith.divf %61, %62 : vector<8x32xf32>
    %c0_24 = arith.constant 0 : index
    %c0_25 = arith.constant 0 : index
    %64 = vector.load %arg6[%c0_24, %c0_25] : memref<8x32xf32, #tpu.memory_space<vmem>>, vector<8x32xf32>
    %65 = arith.mulf %55, %64 : vector<8x32xf32>
    %66 = arith.mulf %49, %57 : vector<8x32xf32>
    %67 = arith.addf %65, %66 : vector<8x32xf32>
    %c0_26 = arith.constant 0 : index
    %c0_27 = arith.constant 0 : index
    %68 = vector.load %arg6[%c0_26, %c0_27] : memref<8x32xf32, #tpu.memory_space<vmem>>, vector<8x32xf32>
    tpu.vector_store %arg6[%c0_26, %c0_27], %67 {strides = array<i32>} : memref<8x32xf32, #tpu.memory_space<vmem>>, vector<8x32xf32>,
    %69 = math.tanh %67 : vector<8x32xf32>
    %70 = arith.mulf %63, %69 : vector<8x32xf32>
    %c0_28 = arith.constant 0 : index
    %c0_29 = arith.constant 0 : index
    %71 = vector.load %arg5[%c0_28, %c0_29] : memref<8x32xf32, #tpu.memory_space<vmem>>, vector<8x32xf32>
    tpu.vector_store %arg5[%c0_28, %c0_29], %70 {strides = array<i32>} : memref<8x32xf32, #tpu.memory_space<vmem>>, vector<8x32xf32>,
    %c2_i32 = arith.constant 2 : i32
    %72 = arith.index_cast %c2_i32 : i32 to index
    %c0_30 = arith.constant 0 : index
    %c0_31 = arith.constant 0 : index
    %73 = vector.load %arg2[%72, %c0_30, %c0_31] : memref<8x8x128xf32, #tpu.memory_space<vmem>>, vector<1x8x128xf32>
    %74 = vector.shape_cast %73 : vector<1x8x128xf32> to vector<8x128xf32>
    %c0_32 = arith.constant 0 : index
    %c0_33 = arith.constant 0 : index
    %75 = vector.load %arg5[%c0_32, %c0_33] : memref<8x32xf32, #tpu.memory_space<vmem>>, vector<8x32xf32>
    %cst_34 = arith.constant dense<0.000000e+00> : vector<8x128xf32>
    %76 = tpu.matmul %75, %3, %cst_34 {dimension_numbers = #tpu.dot_dimension_numbers<[1], [0], [0], [1], [0, 0, 1, 1], [], []>} : vector<8x32xf32>, vector<32x128xf32>, vector<8x128xf32> -> vector<8x128xf32>
    %77 = arith.addf %74, %76 : vector<8x128xf32>
    %78 = vector.extract_strided_slice %77 {offsets = [0, 0], sizes = [8, 32], strides = [1, 1]} : vector<8x128xf32> to vector<8x32xf32>
    %79 = arith.negf %78 : vector<8x32xf32>
    %80 = math.exp %79 : vector<8x32xf32>
    %cst_35 = arith.constant 1.000000e+00 : f32
    %81 = vector.broadcast %cst_35 : f32 to vector<8x32xf32>
    %82 = arith.addf %81, %80 : vector<8x32xf32>
    %83 = arith.divf %81, %82 : vector<8x32xf32>
    %84 = vector.extract_strided_slice %77 {offsets = [0, 32], sizes = [8, 32], strides = [1, 1]} : vector<8x128xf32> to vector<8x32xf32>
    %85 = arith.negf %84 : vector<8x32xf32>
    %86 = math.exp %85 : vector<8x32xf32>
    %cst_36 = arith.constant 1.000000e+00 : f32
    %87 = vector.broadcast %cst_36 : f32 to vector<8x32xf32>
    %88 = arith.addf %87, %86 : vector<8x32xf32>
    %89 = arith.divf %87, %88 : vector<8x32xf32>
    %90 = vector.extract_strided_slice %77 {offsets = [0, 64], sizes = [8, 32], strides = [1, 1]} : vector<8x128xf32> to vector<8x32xf32>
    %91 = math.tanh %90 : vector<8x32xf32>
    %92 = vector.extract_strided_slice %77 {offsets = [0, 96], sizes = [8, 32], strides = [1, 1]} : vector<8x128xf32> to vector<8x32xf32>
    %93 = arith.negf %92 : vector<8x32xf32>
    %94 = math.exp %93 : vector<8x32xf32>
    %cst_37 = arith.constant 1.000000e+00 : f32
    %95 = vector.broadcast %cst_37 : f32 to vector<8x32xf32>
    %96 = arith.addf %95, %94 : vector<8x32xf32>
    %97 = arith.divf %95, %96 : vector<8x32xf32>
    %c0_38 = arith.constant 0 : index
    %c0_39 = arith.constant 0 : index
    %98 = vector.load %arg6[%c0_38, %c0_39] : memref<8x32xf32, #tpu.memory_space<vmem>>, vector<8x32xf32>
    %99 = arith.mulf %89, %98 : vector<8x32xf32>
    %100 = arith.mulf %83, %91 : vector<8x32xf32>
    %101 = arith.addf %99, %100 : vector<8x32xf32>
    %c0_40 = arith.constant 0 : index
    %c0_41 = arith.constant 0 : index
    %102 = vector.load %arg6[%c0_40, %c0_41] : memref<8x32xf32, #tpu.memory_space<vmem>>, vector<8x32xf32>
    tpu.vector_store %arg6[%c0_40, %c0_41], %101 {strides = array<i32>} : memref<8x32xf32, #tpu.memory_space<vmem>>, vector<8x32xf32>,
    %103 = math.tanh %101 : vector<8x32xf32>
    %104 = arith.mulf %97, %103 : vector<8x32xf32>
    %c0_42 = arith.constant 0 : index
    %c0_43 = arith.constant 0 : index
    %105 = vector.load %arg5[%c0_42, %c0_43] : memref<8x32xf32, #tpu.memory_space<vmem>>, vector<8x32xf32>
    tpu.vector_store %arg5[%c0_42, %c0_43], %104 {strides = array<i32>} : memref<8x32xf32, #tpu.memory_space<vmem>>, vector<8x32xf32>,
    %c3_i32 = arith.constant 3 : i32
    %106 = arith.index_cast %c3_i32 : i32 to index
    %c0_44 = arith.constant 0 : index
    %c0_45 = arith.constant 0 : index
    %107 = vector.load %arg2[%106, %c0_44, %c0_45] : memref<8x8x128xf32, #tpu.memory_space<vmem>>, vector<1x8x128xf32>
    %108 = vector.shape_cast %107 : vector<1x8x128xf32> to vector<8x128xf32>
    %c0_46 = arith.constant 0 : index
    %c0_47 = arith.constant 0 : index
    %109 = vector.load %arg5[%c0_46, %c0_47] : memref<8x32xf32, #tpu.memory_space<vmem>>, vector<8x32xf32>
    %cst_48 = arith.constant dense<0.000000e+00> : vector<8x128xf32>
    %110 = tpu.matmul %109, %3, %cst_48 {dimension_numbers = #tpu.dot_dimension_numbers<[1], [0], [0], [1], [0, 0, 1, 1], [], []>} : vector<8x32xf32>, vector<32x128xf32>, vector<8x128xf32> -> vector<8x128xf32>
    %111 = arith.addf %108, %110 : vector<8x128xf32>
    %112 = vector.extract_strided_slice %111 {offsets = [0, 0], sizes = [8, 32], strides = [1, 1]} : vector<8x128xf32> to vector<8x32xf32>
    %113 = arith.negf %112 : vector<8x32xf32>
    %114 = math.exp %113 : vector<8x32xf32>
    %cst_49 = arith.constant 1.000000e+00 : f32
    %115 = vector.broadcast %cst_49 : f32 to vector<8x32xf32>
    %116 = arith.addf %115, %114 : vector<8x32xf32>
    %117 = arith.divf %115, %116 : vector<8x32xf32>
    %118 = vector.extract_strided_slice %111 {offsets = [0, 32], sizes = [8, 32], strides = [1, 1]} : vector<8x128xf32> to vector<8x32xf32>
    %119 = arith.negf %118 : vector<8x32xf32>
    %120 = math.exp %119 : vector<8x32xf32>
    %cst_50 = arith.constant 1.000000e+00 : f32
    %121 = vector.broadcast %cst_50 : f32 to vector<8x32xf32>
    %122 = arith.addf %121, %120 : vector<8x32xf32>
    %123 = arith.divf %121, %122 : vector<8x32xf32>
    %124 = vector.extract_strided_slice %111 {offsets = [0, 64], sizes = [8, 32], strides = [1, 1]} : vector<8x128xf32> to vector<8x32xf32>
    %125 = math.tanh %124 : vector<8x32xf32>
    %126 = vector.extract_strided_slice %111 {offsets = [0, 96], sizes = [8, 32], strides = [1, 1]} : vector<8x128xf32> to vector<8x32xf32>
    %127 = arith.negf %126 : vector<8x32xf32>
    %128 = math.exp %127 : vector<8x32xf32>
    %cst_51 = arith.constant 1.000000e+00 : f32
    %129 = vector.broadcast %cst_51 : f32 to vector<8x32xf32>
    %130 = arith.addf %129, %128 : vector<8x32xf32>
    %131 = arith.divf %129, %130 : vector<8x32xf32>
    %c0_52 = arith.constant 0 : index
    %c0_53 = arith.constant 0 : index
    %132 = vector.load %arg6[%c0_52, %c0_53] : memref<8x32xf32, #tpu.memory_space<vmem>>, vector<8x32xf32>
    %133 = arith.mulf %123, %132 : vector<8x32xf32>
    %134 = arith.mulf %117, %125 : vector<8x32xf32>
    %135 = arith.addf %133, %134 : vector<8x32xf32>
    %c0_54 = arith.constant 0 : index
    %c0_55 = arith.constant 0 : index
    %136 = vector.load %arg6[%c0_54, %c0_55] : memref<8x32xf32, #tpu.memory_space<vmem>>, vector<8x32xf32>
    tpu.vector_store %arg6[%c0_54, %c0_55], %135 {strides = array<i32>} : memref<8x32xf32, #tpu.memory_space<vmem>>, vector<8x32xf32>,
    %137 = math.tanh %135 : vector<8x32xf32>
    %138 = arith.mulf %131, %137 : vector<8x32xf32>
    %c0_56 = arith.constant 0 : index
    %c0_57 = arith.constant 0 : index
    %139 = vector.load %arg5[%c0_56, %c0_57] : memref<8x32xf32, #tpu.memory_space<vmem>>, vector<8x32xf32>
    tpu.vector_store %arg5[%c0_56, %c0_57], %138 {strides = array<i32>} : memref<8x32xf32, #tpu.memory_space<vmem>>, vector<8x32xf32>,
    %c4_i32 = arith.constant 4 : i32
    %140 = arith.index_cast %c4_i32 : i32 to index
    %c0_58 = arith.constant 0 : index
    %c0_59 = arith.constant 0 : index
    %141 = vector.load %arg2[%140, %c0_58, %c0_59] : memref<8x8x128xf32, #tpu.memory_space<vmem>>, vector<1x8x128xf32>
    %142 = vector.shape_cast %141 : vector<1x8x128xf32> to vector<8x128xf32>
    %c0_60 = arith.constant 0 : index
    %c0_61 = arith.constant 0 : index
    %143 = vector.load %arg5[%c0_60, %c0_61] : memref<8x32xf32, #tpu.memory_space<vmem>>, vector<8x32xf32>
    %cst_62 = arith.constant dense<0.000000e+00> : vector<8x128xf32>
    %144 = tpu.matmul %143, %3, %cst_62 {dimension_numbers = #tpu.dot_dimension_numbers<[1], [0], [0], [1], [0, 0, 1, 1], [], []>} : vector<8x32xf32>, vector<32x128xf32>, vector<8x128xf32> -> vector<8x128xf32>
    %145 = arith.addf %142, %144 : vector<8x128xf32>
    %146 = vector.extract_strided_slice %145 {offsets = [0, 0], sizes = [8, 32], strides = [1, 1]} : vector<8x128xf32> to vector<8x32xf32>
    %147 = arith.negf %146 : vector<8x32xf32>
    %148 = math.exp %147 : vector<8x32xf32>
    %cst_63 = arith.constant 1.000000e+00 : f32
    %149 = vector.broadcast %cst_63 : f32 to vector<8x32xf32>
    %150 = arith.addf %149, %148 : vector<8x32xf32>
    %151 = arith.divf %149, %150 : vector<8x32xf32>
    %152 = vector.extract_strided_slice %145 {offsets = [0, 32], sizes = [8, 32], strides = [1, 1]} : vector<8x128xf32> to vector<8x32xf32>
    %153 = arith.negf %152 : vector<8x32xf32>
    %154 = math.exp %153 : vector<8x32xf32>
    %cst_64 = arith.constant 1.000000e+00 : f32
    %155 = vector.broadcast %cst_64 : f32 to vector<8x32xf32>
    %156 = arith.addf %155, %154 : vector<8x32xf32>
    %157 = arith.divf %155, %156 : vector<8x32xf32>
    %158 = vector.extract_strided_slice %145 {offsets = [0, 64], sizes = [8, 32], strides = [1, 1]} : vector<8x128xf32> to vector<8x32xf32>
    %159 = math.tanh %158 : vector<8x32xf32>
    %160 = vector.extract_strided_slice %145 {offsets = [0, 96], sizes = [8, 32], strides = [1, 1]} : vector<8x128xf32> to vector<8x32xf32>
    %161 = arith.negf %160 : vector<8x32xf32>
    %162 = math.exp %161 : vector<8x32xf32>
    %cst_65 = arith.constant 1.000000e+00 : f32
    %163 = vector.broadcast %cst_65 : f32 to vector<8x32xf32>
    %164 = arith.addf %163, %162 : vector<8x32xf32>
    %165 = arith.divf %163, %164 : vector<8x32xf32>
    %c0_66 = arith.constant 0 : index
    %c0_67 = arith.constant 0 : index
    %166 = vector.load %arg6[%c0_66, %c0_67] : memref<8x32xf32, #tpu.memory_space<vmem>>, vector<8x32xf32>
    %167 = arith.mulf %157, %166 : vector<8x32xf32>
    %168 = arith.mulf %151, %159 : vector<8x32xf32>
    %169 = arith.addf %167, %168 : vector<8x32xf32>
    %c0_68 = arith.constant 0 : index
    %c0_69 = arith.constant 0 : index
    %170 = vector.load %arg6[%c0_68, %c0_69] : memref<8x32xf32, #tpu.memory_space<vmem>>, vector<8x32xf32>
    tpu.vector_store %arg6[%c0_68, %c0_69], %169 {strides = array<i32>} : memref<8x32xf32, #tpu.memory_space<vmem>>, vector<8x32xf32>,
    %171 = math.tanh %169 : vector<8x32xf32>
    %172 = arith.mulf %165, %171 : vector<8x32xf32>
    %c0_70 = arith.constant 0 : index
    %c0_71 = arith.constant 0 : index
    %173 = vector.load %arg5[%c0_70, %c0_71] : memref<8x32xf32, #tpu.memory_space<vmem>>, vector<8x32xf32>
    tpu.vector_store %arg5[%c0_70, %c0_71], %172 {strides = array<i32>} : memref<8x32xf32, #tpu.memory_space<vmem>>, vector<8x32xf32>,
    %c5_i32 = arith.constant 5 : i32
    %174 = arith.index_cast %c5_i32 : i32 to index
    %c0_72 = arith.constant 0 : index
    %c0_73 = arith.constant 0 : index
    %175 = vector.load %arg2[%174, %c0_72, %c0_73] : memref<8x8x128xf32, #tpu.memory_space<vmem>>, vector<1x8x128xf32>
    %176 = vector.shape_cast %175 : vector<1x8x128xf32> to vector<8x128xf32>
    %c0_74 = arith.constant 0 : index
    %c0_75 = arith.constant 0 : index
    %177 = vector.load %arg5[%c0_74, %c0_75] : memref<8x32xf32, #tpu.memory_space<vmem>>, vector<8x32xf32>
    %cst_76 = arith.constant dense<0.000000e+00> : vector<8x128xf32>
    %178 = tpu.matmul %177, %3, %cst_76 {dimension_numbers = #tpu.dot_dimension_numbers<[1], [0], [0], [1], [0, 0, 1, 1], [], []>} : vector<8x32xf32>, vector<32x128xf32>, vector<8x128xf32> -> vector<8x128xf32>
    %179 = arith.addf %176, %178 : vector<8x128xf32>
    %180 = vector.extract_strided_slice %179 {offsets = [0, 0], sizes = [8, 32], strides = [1, 1]} : vector<8x128xf32> to vector<8x32xf32>
    %181 = arith.negf %180 : vector<8x32xf32>
    %182 = math.exp %181 : vector<8x32xf32>
    %cst_77 = arith.constant 1.000000e+00 : f32
    %183 = vector.broadcast %cst_77 : f32 to vector<8x32xf32>
    %184 = arith.addf %183, %182 : vector<8x32xf32>
    %185 = arith.divf %183, %184 : vector<8x32xf32>
    %186 = vector.extract_strided_slice %179 {offsets = [0, 32], sizes = [8, 32], strides = [1, 1]} : vector<8x128xf32> to vector<8x32xf32>
    %187 = arith.negf %186 : vector<8x32xf32>
    %188 = math.exp %187 : vector<8x32xf32>
    %cst_78 = arith.constant 1.000000e+00 : f32
    %189 = vector.broadcast %cst_78 : f32 to vector<8x32xf32>
    %190 = arith.addf %189, %188 : vector<8x32xf32>
    %191 = arith.divf %189, %190 : vector<8x32xf32>
    %192 = vector.extract_strided_slice %179 {offsets = [0, 64], sizes = [8, 32], strides = [1, 1]} : vector<8x128xf32> to vector<8x32xf32>
    %193 = math.tanh %192 : vector<8x32xf32>
    %194 = vector.extract_strided_slice %179 {offsets = [0, 96], sizes = [8, 32], strides = [1, 1]} : vector<8x128xf32> to vector<8x32xf32>
    %195 = arith.negf %194 : vector<8x32xf32>
    %196 = math.exp %195 : vector<8x32xf32>
    %cst_79 = arith.constant 1.000000e+00 : f32
    %197 = vector.broadcast %cst_79 : f32 to vector<8x32xf32>
    %198 = arith.addf %197, %196 : vector<8x32xf32>
    %199 = arith.divf %197, %198 : vector<8x32xf32>
    %c0_80 = arith.constant 0 : index
    %c0_81 = arith.constant 0 : index
    %200 = vector.load %arg6[%c0_80, %c0_81] : memref<8x32xf32, #tpu.memory_space<vmem>>, vector<8x32xf32>
    %201 = arith.mulf %191, %200 : vector<8x32xf32>
    %202 = arith.mulf %185, %193 : vector<8x32xf32>
    %203 = arith.addf %201, %202 : vector<8x32xf32>
    %c0_82 = arith.constant 0 : index
    %c0_83 = arith.constant 0 : index
    %204 = vector.load %arg6[%c0_82, %c0_83] : memref<8x32xf32, #tpu.memory_space<vmem>>, vector<8x32xf32>
    tpu.vector_store %arg6[%c0_82, %c0_83], %203 {strides = array<i32>} : memref<8x32xf32, #tpu.memory_space<vmem>>, vector<8x32xf32>,
    %205 = math.tanh %203 : vector<8x32xf32>
    %206 = arith.mulf %199, %205 : vector<8x32xf32>
    %c0_84 = arith.constant 0 : index
    %c0_85 = arith.constant 0 : index
    %207 = vector.load %arg5[%c0_84, %c0_85] : memref<8x32xf32, #tpu.memory_space<vmem>>, vector<8x32xf32>
    tpu.vector_store %arg5[%c0_84, %c0_85], %206 {strides = array<i32>} : memref<8x32xf32, #tpu.memory_space<vmem>>, vector<8x32xf32>,
    %c6_i32 = arith.constant 6 : i32
    %208 = arith.index_cast %c6_i32 : i32 to index
    %c0_86 = arith.constant 0 : index
    %c0_87 = arith.constant 0 : index
    %209 = vector.load %arg2[%208, %c0_86, %c0_87] : memref<8x8x128xf32, #tpu.memory_space<vmem>>, vector<1x8x128xf32>
    %210 = vector.shape_cast %209 : vector<1x8x128xf32> to vector<8x128xf32>
    %c0_88 = arith.constant 0 : index
    %c0_89 = arith.constant 0 : index
    %211 = vector.load %arg5[%c0_88, %c0_89] : memref<8x32xf32, #tpu.memory_space<vmem>>, vector<8x32xf32>
    %cst_90 = arith.constant dense<0.000000e+00> : vector<8x128xf32>
    %212 = tpu.matmul %211, %3, %cst_90 {dimension_numbers = #tpu.dot_dimension_numbers<[1], [0], [0], [1], [0, 0, 1, 1], [], []>} : vector<8x32xf32>, vector<32x128xf32>, vector<8x128xf32> -> vector<8x128xf32>
    %213 = arith.addf %210, %212 : vector<8x128xf32>
    %214 = vector.extract_strided_slice %213 {offsets = [0, 0], sizes = [8, 32], strides = [1, 1]} : vector<8x128xf32> to vector<8x32xf32>
    %215 = arith.negf %214 : vector<8x32xf32>
    %216 = math.exp %215 : vector<8x32xf32>
    %cst_91 = arith.constant 1.000000e+00 : f32
    %217 = vector.broadcast %cst_91 : f32 to vector<8x32xf32>
    %218 = arith.addf %217, %216 : vector<8x32xf32>
    %219 = arith.divf %217, %218 : vector<8x32xf32>
    %220 = vector.extract_strided_slice %213 {offsets = [0, 32], sizes = [8, 32], strides = [1, 1]} : vector<8x128xf32> to vector<8x32xf32>
    %221 = arith.negf %220 : vector<8x32xf32>
    %222 = math.exp %221 : vector<8x32xf32>
    %cst_92 = arith.constant 1.000000e+00 : f32
    %223 = vector.broadcast %cst_92 : f32 to vector<8x32xf32>
    %224 = arith.addf %223, %222 : vector<8x32xf32>
    %225 = arith.divf %223, %224 : vector<8x32xf32>
    %226 = vector.extract_strided_slice %213 {offsets = [0, 64], sizes = [8, 32], strides = [1, 1]} : vector<8x128xf32> to vector<8x32xf32>
    %227 = math.tanh %226 : vector<8x32xf32>
    %228 = vector.extract_strided_slice %213 {offsets = [0, 96], sizes = [8, 32], strides = [1, 1]} : vector<8x128xf32> to vector<8x32xf32>
    %229 = arith.negf %228 : vector<8x32xf32>
    %230 = math.exp %229 : vector<8x32xf32>
    %cst_93 = arith.constant 1.000000e+00 : f32
    %231 = vector.broadcast %cst_93 : f32 to vector<8x32xf32>
    %232 = arith.addf %231, %230 : vector<8x32xf32>
    %233 = arith.divf %231, %232 : vector<8x32xf32>
    %c0_94 = arith.constant 0 : index
    %c0_95 = arith.constant 0 : index
    %234 = vector.load %arg6[%c0_94, %c0_95] : memref<8x32xf32, #tpu.memory_space<vmem>>, vector<8x32xf32>
    %235 = arith.mulf %225, %234 : vector<8x32xf32>
    %236 = arith.mulf %219, %227 : vector<8x32xf32>
    %237 = arith.addf %235, %236 : vector<8x32xf32>
    %c0_96 = arith.constant 0 : index
    %c0_97 = arith.constant 0 : index
    %238 = vector.load %arg6[%c0_96, %c0_97] : memref<8x32xf32, #tpu.memory_space<vmem>>, vector<8x32xf32>
    tpu.vector_store %arg6[%c0_96, %c0_97], %237 {strides = array<i32>} : memref<8x32xf32, #tpu.memory_space<vmem>>, vector<8x32xf32>,
    %239 = math.tanh %237 : vector<8x32xf32>
    %240 = arith.mulf %233, %239 : vector<8x32xf32>
    %c0_98 = arith.constant 0 : index
    %c0_99 = arith.constant 0 : index
    %241 = vector.load %arg5[%c0_98, %c0_99] : memref<8x32xf32, #tpu.memory_space<vmem>>, vector<8x32xf32>
    tpu.vector_store %arg5[%c0_98, %c0_99], %240 {strides = array<i32>} : memref<8x32xf32, #tpu.memory_space<vmem>>, vector<8x32xf32>,
    %c7_i32 = arith.constant 7 : i32
    %242 = arith.index_cast %c7_i32 : i32 to index
    %c0_100 = arith.constant 0 : index
    %c0_101 = arith.constant 0 : index
    %243 = vector.load %arg2[%242, %c0_100, %c0_101] : memref<8x8x128xf32, #tpu.memory_space<vmem>>, vector<1x8x128xf32>
    %244 = vector.shape_cast %243 : vector<1x8x128xf32> to vector<8x128xf32>
    %c0_102 = arith.constant 0 : index
    %c0_103 = arith.constant 0 : index
    %245 = vector.load %arg5[%c0_102, %c0_103] : memref<8x32xf32, #tpu.memory_space<vmem>>, vector<8x32xf32>
    %cst_104 = arith.constant dense<0.000000e+00> : vector<8x128xf32>
    %246 = tpu.matmul %245, %3, %cst_104 {dimension_numbers = #tpu.dot_dimension_numbers<[1], [0], [0], [1], [0, 0, 1, 1], [], []>} : vector<8x32xf32>, vector<32x128xf32>, vector<8x128xf32> -> vector<8x128xf32>
    %247 = arith.addf %244, %246 : vector<8x128xf32>
    %248 = vector.extract_strided_slice %247 {offsets = [0, 0], sizes = [8, 32], strides = [1, 1]} : vector<8x128xf32> to vector<8x32xf32>
    %249 = arith.negf %248 : vector<8x32xf32>
    %250 = math.exp %249 : vector<8x32xf32>
    %cst_105 = arith.constant 1.000000e+00 : f32
    %251 = vector.broadcast %cst_105 : f32 to vector<8x32xf32>
    %252 = arith.addf %251, %250 : vector<8x32xf32>
    %253 = arith.divf %251, %252 : vector<8x32xf32>
    %254 = vector.extract_strided_slice %247 {offsets = [0, 32], sizes = [8, 32], strides = [1, 1]} : vector<8x128xf32> to vector<8x32xf32>
    %255 = arith.negf %254 : vector<8x32xf32>
    %256 = math.exp %255 : vector<8x32xf32>
    %cst_106 = arith.constant 1.000000e+00 : f32
    %257 = vector.broadcast %cst_106 : f32 to vector<8x32xf32>
    %258 = arith.addf %257, %256 : vector<8x32xf32>
    %259 = arith.divf %257, %258 : vector<8x32xf32>
    %260 = vector.extract_strided_slice %247 {offsets = [0, 64], sizes = [8, 32], strides = [1, 1]} : vector<8x128xf32> to vector<8x32xf32>
    %261 = math.tanh %260 : vector<8x32xf32>
    %262 = vector.extract_strided_slice %247 {offsets = [0, 96], sizes = [8, 32], strides = [1, 1]} : vector<8x128xf32> to vector<8x32xf32>
    %263 = arith.negf %262 : vector<8x32xf32>
    %264 = math.exp %263 : vector<8x32xf32>
    %cst_107 = arith.constant 1.000000e+00 : f32
    %265 = vector.broadcast %cst_107 : f32 to vector<8x32xf32>
    %266 = arith.addf %265, %264 : vector<8x32xf32>
    %267 = arith.divf %265, %266 : vector<8x32xf32>
    %c0_108 = arith.constant 0 : index
    %c0_109 = arith.constant 0 : index
    %268 = vector.load %arg6[%c0_108, %c0_109] : memref<8x32xf32, #tpu.memory_space<vmem>>, vector<8x32xf32>
    %269 = arith.mulf %259, %268 : vector<8x32xf32>
    %270 = arith.mulf %253, %261 : vector<8x32xf32>
    %271 = arith.addf %269, %270 : vector<8x32xf32>
    %c0_110 = arith.constant 0 : index
    %c0_111 = arith.constant 0 : index
    %272 = vector.load %arg6[%c0_110, %c0_111] : memref<8x32xf32, #tpu.memory_space<vmem>>, vector<8x32xf32>
    tpu.vector_store %arg6[%c0_110, %c0_111], %271 {strides = array<i32>} : memref<8x32xf32, #tpu.memory_space<vmem>>, vector<8x32xf32>,
    %273 = math.tanh %271 : vector<8x32xf32>
    %274 = arith.mulf %267, %273 : vector<8x32xf32>
    %c0_112 = arith.constant 0 : index
    %c0_113 = arith.constant 0 : index
    %275 = vector.load %arg5[%c0_112, %c0_113] : memref<8x32xf32, #tpu.memory_space<vmem>>, vector<8x32xf32>
    tpu.vector_store %arg5[%c0_112, %c0_113], %274 {strides = array<i32>} : memref<8x32xf32, #tpu.memory_space<vmem>>, vector<8x32xf32>,
    %c8_i32 = arith.constant 8 : i32
    %c0_i32_114 = arith.constant 0 : i32
    %276 = arith.cmpi eq, %arg1, %c0_i32_114 : i32
    %277 = arith.extui %276 : i1 to i32
    %c0_i32_115 = arith.constant 0 : i32
    %278 = arith.cmpi ne, %277, %c0_i32_115 : i32
    scf.if %278 {
      %c0_116 = arith.constant 0 : index
      %c0_117 = arith.constant 0 : index
      %279 = vector.load %arg5[%c0_116, %c0_117] : memref<8x32xf32, #tpu.memory_space<vmem>>, vector<8x32xf32>
      %c0_118 = arith.constant 0 : index
      %c0_119 = arith.constant 0 : index
      %280 = vector.load %arg4[%c0_118, %c0_119] : memref<8x32xf32, #tpu.memory_space<vmem>>, vector<8x32xf32>
      tpu.vector_store %arg4[%c0_118, %c0_119], %279 {strides = array<i32>} : memref<8x32xf32, #tpu.memory_space<vmem>>, vector<8x32xf32>,
    } else {
    }
    return
  }
  func.func @transform_0(%arg0: i32, %arg1: i32) -> (i32, i32, i32) {
    %c0_i32 = arith.constant 0 : i32
    %c0_i32_0 = arith.constant 0 : i32
    return %arg1, %arg0, %c0_i32 : i32, i32, i32
  }
  func.func @transform_1(%arg0: i32, %arg1: i32) -> (i32, i32) {
    %c0_i32 = arith.constant 0 : i32
    %c0_i32_0 = arith.constant 0 : i32
    %c0_i32_1 = arith.constant 0 : i32
    return %c0_i32, %c0_i32_0 : i32, i32
  }
  func.func @transform_2(%arg0: i32, %arg1: i32) -> (i32, i32) {
    %c0_i32 = arith.constant 0 : i32
    %c0_i32_0 = arith.constant 0 : i32
    return %arg0, %c0_i32 : i32, i32
  }
}

</mosaic_0001>

<llo_original>
// kernel: tpu_custom_call.1
$region0: #{tpu_custom_call.1}
  #allocation0 [shape = 'u32[]', space=smem, size = 0x4, offset = 0x4, fixed_abs, tag = 'smem constant byte address 0x4 - core index']
  #allocation1 [shape = 'u32[144,128]{1,0:T(1,128)}', space=vmem, size = 0x12000, scoped, tag = 'internal scratch']
  #allocation2 [shape = 'f32[8,32]{1,0:T(8,128)}', space=vmem, size = 0x1000, scoped, tag = 'scratch operand']
  #allocation3 [shape = 'f32[8,32]{1,0:T(8,128)}', space=vmem, size = 0x1000, scoped, tag = 'scratch operand']
  %s0 = inlined_call_operand.hbm [shape: f32[8,8,128], index: 0, kind: input, shape index: {}]
  %s1 = inlined_call_operand.hbm [shape: f32[32,128], index: 1, kind: input, shape index: {}]
  %s2 = inlined_call_operand.hbm [shape: f32[8,32], index: 2, kind: output, shape index: {}]
  %s3 = sld [smem:[#allocation0]]
  $region34: #{tpu_custom_call.1} parent=0
    _
  %s5 = ssub.s32 1, %s3
  %s6 = scalar_select 0, %s5, %s3
  $region1: #{tpu_custom_call.1} parent=0
    #allocation4 [shape = 'u8[32768]{0}', space=vmem, size = 0x8000, scoped, tag = 'input window, operand 0, single buffered']
    #allocation5 [shape = 's32[1]{0}', space=sflag, size = 0x4, scoped, tag = 'scoped memory for tpu_custom_call.1']
    #allocation6 [shape = 's32[1]{0}', space=sflag, size = 0x4, scoped, tag = 'scoped memory for tpu_custom_call.1']
    #allocation7 [shape = 'u8[16384]{0}', space=vmem, size = 0x4000, scoped, tag = 'input window, operand 1, single buffered']
    #allocation8 [shape = 's32[1]{0}', space=sflag, size = 0x4, scoped, tag = 'scoped memory for tpu_custom_call.1']
    #allocation9 [shape = 'u8[4096]{0}', space=vmem, size = 0x1000, scoped, tag = 'output window, operand 0, single buffered']
    %7 = vsyncpa [#allocation5], 0
    %8 = vsyncpa [#allocation8], 0
    %9 = vsyncpa [#allocation6], 0
    // Predicated region
    $region2: #{tpu_custom_call.1} parent=1 // pred_check
      _
    $region3: #{tpu_custom_call.1} parent=1 // pred_check_branch
      %11 = sbr.rel (0) target = $region5
    $region4: #{tpu_custom_call.1} parent=1 // pred_region
      %s13 = ssub.s32 1024, 1024
      %14 = vsyncadd [#allocation5], %s13
      %s15 = sshll.u32 [#allocation4], 4
      %s16 = int_to_ptr.vmem [resolvable:$true] %s15
      %21 = dma.hbm_to_vmem [thread:$0]  %s0, 1024, %s16, [#allocation5], 128, 128, 8
    $region5: #{tpu_custom_call.1} parent=1 // pred_fallthru
      _
    // Predicated region
    $region6: #{tpu_custom_call.1} parent=1 // pred_check
      _
    $region7: #{tpu_custom_call.1} parent=1 // pred_check_branch
      %23 = sbr.rel (0) target = $region9
    $region8: #{tpu_custom_call.1} parent=1 // pred_region
      %s25 = ssub.s32 512, 512
      %26 = vsyncadd [#allocation8], %s25
      %s27 = sshll.u32 [#allocation7], 4
      %s28 = int_to_ptr.vmem [resolvable:$true] %s27
      %33 = dma.hbm_to_vmem [thread:$0]  %s1, 512, %s28, [#allocation8], 128, 128, 8
    $region9: #{tpu_custom_call.1} parent=1 // pred_fallthru
      _
    // Predicated region
    $region10: #{tpu_custom_call.1} parent=1 // pred_check
      _
    $region11: #{tpu_custom_call.1} parent=1 // pred_check_branch
      %35 = sbr.rel (0) target = $region13
    $region12: #{tpu_custom_call.1} parent=1 // pred_region
      %36 = dma.done [#allocation5], 1024
    $region13: #{tpu_custom_call.1} parent=1 // pred_fallthru
      _
    // Predicated region
    $region14: #{tpu_custom_call.1} parent=1 // pred_check
      _
    $region15: #{tpu_custom_call.1} parent=1 // pred_check_branch
      %38 = sbr.rel (0) target = $region17
    $region16: #{tpu_custom_call.1} parent=1 // pred_region
      %39 = dma.done [#allocation8], 512
    $region17: #{tpu_custom_call.1} parent=1 // pred_fallthru
      _
    %p40 = scmp.eq.s32.totalorder 0, 0
    // Predicated region
    $region18: #{tpu_custom_call.1} parent=1 // pred_check
      %p41 = pneg %p40
    $region19: #{tpu_custom_call.1} parent=1 // pred_check_branch
      %43 = sbr.rel (%p41) target = $region21
    $region20: #{tpu_custom_call.1} parent=1 // pred_region
      %vm44 = vcmask 261120
      %45 = vst.msk [vmem:[#allocation2] sm:$0xff] %vm44, 0.0
      %46 = vst.msk [vmem:[#allocation3] sm:$0xff] %vm44, 0.0
    $region21: #{tpu_custom_call.1} parent=1 // pred_fallthru
      _
    %v47 = vld [vmem:[#allocation7] sm:$0xff]
    %v48 = vld [vmem:[#allocation7 + $0x8] sm:$0xff]
    %v49 = vld [vmem:[#allocation7 + $0x10] sm:$0xff]
    %v50 = vld [vmem:[#allocation7 + $0x18] sm:$0xff]
    %v51 = vld [vmem:[#allocation4] sm:$0xff]
    %v52 = vld [vmem:[#allocation2] sm:$0xff]
    %vm53 = vcmask 261120
    %v55 = vsel %vm53, %v52, 0
    %57 = vmatprep.subr.mxu0 0.0
    %58 = vmatpush1.msra.mxu0 %v47
    %59 = vmatprep.subr.mxu0 0.0
    %60 = vmatpush1.msra.mxu0 %v48
    %61 = vmatprep.subr.mxu0 0.0
    %62 = vmatpush1.msra.mxu0 %v49
    %63 = vmatprep.subr.mxu0 0.0
    %64 = vmatpush1.msra.mxu0 %v50
    %65 = vmatprep.subr.mxu0 0.0
    %66 = vmatpush1.msra.mxu0 0.0
    %67 = vmatprep.subr.mxu0 0.0
    %68 = vmatpush1.msra.mxu0 0.0
    %69 = vmatprep.subr.mxu0 0.0
    %70 = vmatpush1.msra.mxu0 0.0
    %71 = vmatprep.subr.mxu0 0.0
    %72 = vmatpush1.msra.mxu0 0.0
    %73 = vmatprep.subr.mxu0 0.0
    %74 = vmatpush1.msra.mxu0 0.0
    %75 = vmatprep.subr.mxu0 0.0
    %76 = vmatpush1.msra.mxu0 0.0
    %77 = vmatprep.subr.mxu0 0.0
    %78 = vmatpush1.msra.mxu0 0.0
    %79 = vmatprep.subr.mxu0 0.0
    %80 = vmatpush1.msra.mxu0 0.0
    %81 = vmatprep.subr.mxu0 0.0
    %82 = vmatpush1.msra.mxu0 0.0
    %83 = vmatprep.subr.mxu0 0.0
    %84 = vmatpush1.msra.mxu0 0.0
    %85 = vmatprep.subr.mxu0 0.0
    %86 = vmatpush1.msra.mxu0 0.0
    %87 = vmatprep.subr.mxu0 0.0
    %88 = vmatpush1.msra.mxu0 0.0
    %89 = vmatprep.subr.mxu0 0.0
    %90 = vmatpush1.msra.mxu0 0.0
    %91 = vmatprep.subr.mxu0 0.0
    %92 = vmatpush1.msra.mxu0 0.0
    %93 = vmatprep.subr.mxu0 0.0
    %94 = vmatpush1.msra.mxu0 0.0
    %95 = vmatprep.subr.mxu0 0.0
    %96 = vmatpush1.msra.mxu0 0.0
    %97 = vmatprep.subr.mxu0 0.0
    %98 = vmatpush1.msra.mxu0 0.0
    %99 = vmatprep.subr.mxu0 0.0
    %100 = vmatpush1.msra.mxu0 0.0
    %101 = vmatprep.subr.mxu0 0.0
    %102 = vmatpush1.msra.mxu0 0.0
    %103 = vmatprep.subr.mxu0 0.0
    %104 = vmatpush1.msra.mxu0 0.0
    %105 = vmatprep.subr.mxu0 0.0
    %106 = vmatpush1.msra.mxu0 0.0
    %107 = vmatprep.subr.mxu0 0.0
    %108 = vmatpush1.msra.mxu0 0.0
    %109 = vmatprep.subr.mxu0 0.0
    %110 = vmatpush1.msra.mxu0 0.0
    %111 = vmatprep.subr.mxu0 0.0
    %112 = vmatpush1.msra.mxu0 0.0
    %113 = vmatprep.subr.mxu0 0.0
    %114 = vmatpush1.msra.mxu0 0.0
    %115 = vmatprep.subr.mxu0 0.0
    %116 = vmatpush1.msra.mxu0 0.0
    %117 = vmatprep.subr.mxu0 0.0
    %118 = vmatpush1.msra.mxu0 0.0
    %119 = vmatprep.subr.mxu0 0.0
    %120 = vmatpush1.msra.mxu0 0.0
    %121 = vmatprep.mubr.f32.mxu0 0.0
    %122 = vmatmul.mubr.f32.gmra.mrb[0].mxu0 %v55
    %v123 = vpop.f32.mrb[0].mxu0
    %v124 = vadd.f32 0.0, %v123
    %v125 = vpop.f32.mrb[0].mxu0
    %126 = vdwg.mxu0
    %v127 = vadd.f32 %v51, %v124
    %v128 = vxor.u32 %v127, 2147483648
    %v129 = vmul.f32 %v128, 1.442695
    %v130 = vpow.pop %v129
    %v131 = vadd.f32 %v130, 1.0
    %v132 = vrcp.pop %v131
    %v133 = vmul.f32 1.0, %v132
    %v134 = vtanh.pop %v127
    %v135 = vld [vmem:[#allocation3] sm:$0xff]
    %137 = vrot.lane.b32.xlu0 %v135, 32
    %v138 = vpop.permute.xlu0 %137
    %v140 = vmul.f32 %v133, %v138
    %142 = vrot.lane.b32.xlu0 %v134, 64
    %v143 = vpop.permute.xlu0 %142
    %v145 = vmul.f32 %v133, %v143
    %147 = vrot.lane.b32.xlu0 %v145, 32
    %v148 = vpop.permute.xlu0 %147
    %v150 = vadd.f32 %v140, %v148
    %152 = vrot.lane.b32.xlu0 %v150, 96
    %v153 = vpop.permute.xlu0 %152
    %155 = vst.msk [vmem:[#allocation3] sm:$0xff] %vm53, %v153
    %v156 = vtanh.pop %v150
    %158 = vrot.lane.b32.xlu0 %v156, 64
    %v159 = vpop.permute.xlu0 %158
    %v161 = vmul.f32 %v133, %v159
    %163 = vrot.lane.b32.xlu0 %v161, 32
    %v164 = vpop.permute.xlu0 %163
    %166 = vst.msk [vmem:[#allocation2] sm:$0xff] %vm53, %v164
    %s167 = scalar_lea.vmem [#allocation4], 8
    %v168 = vld [vmem:[%s167] sm:$0xff]
    %v169 = vld [vmem:[#allocation2] sm:$0xff]
    %v171 = vsel %vm53, %v169, 0
    %173 = vmatprep.subr.mxu0 0.0
    %174 = vmatpush1.msra.mxu0 %v47
    %175 = vmatprep.subr.mxu0 0.0
    %176 = vmatpush1.msra.mxu0 %v48
    %177 = vmatprep.subr.mxu0 0.0
    %178 = vmatpush1.msra.mxu0 %v49
    %179 = vmatprep.subr.mxu0 0.0
    %180 = vmatpush1.msra.mxu0 %v50
    %181 = vmatprep.subr.mxu0 0.0
    %182 = vmatpush1.msra.mxu0 0.0
    %183 = vmatprep.subr.mxu0 0.0
    %184 = vmatpush1.msra.mxu0 0.0
    %185 = vmatprep.subr.mxu0 0.0
    %186 = vmatpush1.msra.mxu0 0.0
    %187 = vmatprep.subr.mxu0 0.0
    %188 = vmatpush1.msra.mxu0 0.0
    %189 = vmatprep.subr.mxu0 0.0
    %190 = vmatpush1.msra.mxu0 0.0
    %191 = vmatprep.subr.mxu0 0.0
    %192 = vmatpush1.msra.mxu0 0.0
    %193 = vmatprep.subr.mxu0 0.0
    %194 = vmatpush1.msra.mxu0 0.0
    %195 = vmatprep.subr.mxu0 0.0
    %196 = vmatpush1.msra.mxu0 0.0
    %197 = vmatprep.subr.mxu0 0.0
    %198 = vmatpush1.msra.mxu0 0.0
    %199 = vmatprep.subr.mxu0 0.0
    %200 = vmatpush1.msra.mxu0 0.0
    %201 = vmatprep.subr.mxu0 0.0
    %202 = vmatpush1.msra.mxu0 0.0
    %203 = vmatprep.subr.mxu0 0.0
    %204 = vmatpush1.msra.mxu0 0.0
    %205 = vmatprep.subr.mxu0 0.0
    %206 = vmatpush1.msra.mxu0 0.0
    %207 = vmatprep.subr.mxu0 0.0
    %208 = vmatpush1.msra.mxu0 0.0
    %209 = vmatprep.subr.mxu0 0.0
    %210 = vmatpush1.msra.mxu0 0.0
    %211 = vmatprep.subr.mxu0 0.0
    %212 = vmatpush1.msra.mxu0 0.0
    %213 = vmatprep.subr.mxu0 0.0
    %214 = vmatpush1.msra.mxu0 0.0
    %215 = vmatprep.subr.mxu0 0.0
    %216 = vmatpush1.msra.mxu0 0.0
    %217 = vmatprep.subr.mxu0 0.0
    %218 = vmatpush1.msra.mxu0 0.0
    %219 = vmatprep.subr.mxu0 0.0
    %220 = vmatpush1.msra.mxu0 0.0
    %221 = vmatprep.subr.mxu0 0.0
    %222 = vmatpush1.msra.mxu0 0.0
    %223 = vmatprep.subr.mxu0 0.0
    %224 = vmatpush1.msra.mxu0 0.0
    %225 = vmatprep.subr.mxu0 0.0
    %226 = vmatpush1.msra.mxu0 0.0
    %227 = vmatprep.subr.mxu0 0.0
    %228 = vmatpush1.msra.mxu0 0.0
    %229 = vmatprep.subr.mxu0 0.0
    %230 = vmatpush1.msra.mxu0 0.0
    %231 = vmatprep.subr.mxu0 0.0
    %232 = vmatpush1.msra.mxu0 0.0
    %233 = vmatprep.subr.mxu0 0.0
    %234 = vmatpush1.msra.mxu0 0.0
    %235 = vmatprep.subr.mxu0 0.0
    %236 = vmatpush1.msra.mxu0 0.0
    %237 = vmatprep.mubr.f32.mxu0 0.0
    %238 = vmatmul.mubr.f32.gmra.mrb[0].mxu0 %v171
    %v239 = vpop.f32.mrb[0].mxu0
    %v240 = vadd.f32 0.0, %v239
    %v241 = vpop.f32.mrb[0].mxu0
    %242 = vdwg.mxu0
    %v243 = vadd.f32 %v168, %v240
    %v244 = vxor.u32 %v243, 2147483648
    %v245 = vmul.f32 %v244, 1.442695
    %v246 = vpow.pop %v245
    %v247 = vadd.f32 %v246, 1.0
    %v248 = vrcp.pop %v247
    %v249 = vmul.f32 1.0, %v248
    %v250 = vtanh.pop %v243
    %v251 = vld [vmem:[#allocation3] sm:$0xff]
    %253 = vrot.lane.b32.xlu0 %v251, 32
    %v254 = vpop.permute.xlu0 %253
    %v256 = vmul.f32 %v249, %v254
    %258 = vrot.lane.b32.xlu0 %v250, 64
    %v259 = vpop.permute.xlu0 %258
    %v261 = vmul.f32 %v249, %v259
    %263 = vrot.lane.b32.xlu0 %v261, 32
    %v264 = vpop.permute.xlu0 %263
    %v266 = vadd.f32 %v256, %v264
    %268 = vrot.lane.b32.xlu0 %v266, 96
    %v269 = vpop.permute.xlu0 %268
    %271 = vst.msk [vmem:[#allocation3] sm:$0xff] %vm53, %v269
    %v272 = vtanh.pop %v266
    %274 = vrot.lane.b32.xlu0 %v272, 64
    %v275 = vpop.permute.xlu0 %274
    %v277 = vmul.f32 %v249, %v275
    %279 = vrot.lane.b32.xlu0 %v277, 32
    %v280 = vpop.permute.xlu0 %279
    %282 = vst.msk [vmem:[#allocation2] sm:$0xff] %vm53, %v280
    %s283 = scalar_lea.vmem [#allocation4], 16
    %v284 = vld [vmem:[%s283] sm:$0xff]
    %v285 = vld [vmem:[#allocation2] sm:$0xff]
    %v287 = vsel %vm53, %v285, 0
    %289 = vmatprep.subr.mxu0 0.0
    %290 = vmatpush1.msra.mxu0 %v47
    %291 = vmatprep.subr.mxu0 0.0
    %292 = vmatpush1.msra.mxu0 %v48
    %293 = vmatprep.subr.mxu0 0.0
    %294 = vmatpush1.msra.mxu0 %v49
    %295 = vmatprep.subr.mxu0 0.0
    %296 = vmatpush1.msra.mxu0 %v50
    %297 = vmatprep.subr.mxu0 0.0
    %298 = vmatpush1.msra.mxu0 0.0
    %299 = vmatprep.subr.mxu0 0.0
    %300 = vmatpush1.msra.mxu0 0.0
    %301 = vmatprep.subr.mxu0 0.0
    %302 = vmatpush1.msra.mxu0 0.0
    %303 = vmatprep.subr.mxu0 0.0
    %304 = vmatpush1.msra.mxu0 0.0
    %305 = vmatprep.subr.mxu0 0.0
    %306 = vmatpush1.msra.mxu0 0.0
    %307 = vmatprep.subr.mxu0 0.0
    %308 = vmatpush1.msra.mxu0 0.0
    %309 = vmatprep.subr.mxu0 0.0
    %310 = vmatpush1.msra.mxu0 0.0
    %311 = vmatprep.subr.mxu0 0.0
    %312 = vmatpush1.msra.mxu0 0.0
    %313 = vmatprep.subr.mxu0 0.0
    %314 = vmatpush1.msra.mxu0 0.0
    %315 = vmatprep.subr.mxu0 0.0
    %316 = vmatpush1.msra.mxu0 0.0
    %317 = vmatprep.subr.mxu0 0.0
    %318 = vmatpush1.msra.mxu0 0.0
    %319 = vmatprep.subr.mxu0 0.0
    %320 = vmatpush1.msra.mxu0 0.0
    %321 = vmatprep.subr.mxu0 0.0
    %322 = vmatpush1.msra.mxu0 0.0
    %323 = vmatprep.subr.mxu0 0.0
    %324 = vmatpush1.msra.mxu0 0.0
    %325 = vmatprep.subr.mxu0 0.0
    %326 = vmatpush1.msra.mxu0 0.0
    %327 = vmatprep.subr.mxu0 0.0
    %328 = vmatpush1.msra.mxu0 0.0
    %329 = vmatprep.subr.mxu0 0.0
    %330 = vmatpush1.msra.mxu0 0.0
    %331 = vmatprep.subr.mxu0 0.0
    %332 = vmatpush1.msra.mxu0 0.0
    %333 = vmatprep.subr.mxu0 0.0
    %334 = vmatpush1.msra.mxu0 0.0
    %335 = vmatprep.subr.mxu0 0.0
    %336 = vmatpush1.msra.mxu0 0.0
    %337 = vmatprep.subr.mxu0 0.0
    %338 = vmatpush1.msra.mxu0 0.0
    %339 = vmatprep.subr.mxu0 0.0
    %340 = vmatpush1.msra.mxu0 0.0
    %341 = vmatprep.subr.mxu0 0.0
    %342 = vmatpush1.msra.mxu0 0.0
    %343 = vmatprep.subr.mxu0 0.0
    %344 = vmatpush1.msra.mxu0 0.0
    %345 = vmatprep.subr.mxu0 0.0
    %346 = vmatpush1.msra.mxu0 0.0
    %347 = vmatprep.subr.mxu0 0.0
    %348 = vmatpush1.msra.mxu0 0.0
    %349 = vmatprep.subr.mxu0 0.0
    %350 = vmatpush1.msra.mxu0 0.0
    %351 = vmatprep.subr.mxu0 0.0
    %352 = vmatpush1.msra.mxu0 0.0
    %353 = vmatprep.mubr.f32.mxu0 0.0
    %354 = vmatmul.mubr.f32.gmra.mrb[0].mxu0 %v287
    %v355 = vpop.f32.mrb[0].mxu0
    %v356 = vadd.f32 0.0, %v355
    %v357 = vpop.f32.mrb[0].mxu0
    %358 = vdwg.mxu0
    %v359 = vadd.f32 %v284, %v356
    %v360 = vxor.u32 %v359, 2147483648
    %v361 = vmul.f32 %v360, 1.442695
    %v362 = vpow.pop %v361
    %v363 = vadd.f32 %v362, 1.0
    %v364 = vrcp.pop %v363
    %v365 = vmul.f32 1.0, %v364
    %v366 = vtanh.pop %v359
    %v367 = vld [vmem:[#allocation3] sm:$0xff]
    %369 = vrot.lane.b32.xlu0 %v367, 32
    %v370 = vpop.permute.xlu0 %369
    %v372 = vmul.f32 %v365, %v370
    %374 = vrot.lane.b32.xlu0 %v366, 64
    %v375 = vpop.permute.xlu0 %374
    %v377 = vmul.f32 %v365, %v375
    %379 = vrot.lane.b32.xlu0 %v377, 32
    %v380 = vpop.permute.xlu0 %379
    %v382 = vadd.f32 %v372, %v380
    %384 = vrot.lane.b32.xlu0 %v382, 96
    %v385 = vpop.permute.xlu0 %384
    %387 = vst.msk [vmem:[#allocation3] sm:$0xff] %vm53, %v385
    %v388 = vtanh.pop %v382
    %390 = vrot.lane.b32.xlu0 %v388, 64
    %v391 = vpop.permute.xlu0 %390
    %v393 = vmul.f32 %v365, %v391
    %395 = vrot.lane.b32.xlu0 %v393, 32
    %v396 = vpop.permute.xlu0 %395
    %398 = vst.msk [vmem:[#allocation2] sm:$0xff] %vm53, %v396
    %s399 = scalar_lea.vmem [#allocation4], 24
    %v400 = vld [vmem:[%s399] sm:$0xff]
    %v401 = vld [vmem:[#allocation2] sm:$0xff]
    %v403 = vsel %vm53, %v401, 0
    %405 = vmatprep.subr.mxu0 0.0
    %406 = vmatpush1.msra.mxu0 %v47
    %407 = vmatprep.subr.mxu0 0.0
    %408 = vmatpush1.msra.mxu0 %v48
    %409 = vmatprep.subr.mxu0 0.0
    %410 = vmatpush1.msra.mxu0 %v49
    %411 = vmatprep.subr.mxu0 0.0
    %412 = vmatpush1.msra.mxu0 %v50
    %413 = vmatprep.subr.mxu0 0.0
    %414 = vmatpush1.msra.mxu0 0.0
    %415 = vmatprep.subr.mxu0 0.0
    %416 = vmatpush1.msra.mxu0 0.0
    %417 = vmatprep.subr.mxu0 0.0
    %418 = vmatpush1.msra.mxu0 0.0
    %419 = vmatprep.subr.mxu0 0.0
    %420 = vmatpush1.msra.mxu0 0.0
    %421 = vmatprep.subr.mxu0 0.0
    %422 = vmatpush1.msra.mxu0 0.0
    %423 = vmatprep.subr.mxu0 0.0
    %424 = vmatpush1.msra.mxu0 0.0
    %425 = vmatprep.subr.mxu0 0.0
    %426 = vmatpush1.msra.mxu0 0.0
    %427 = vmatprep.subr.mxu0 0.0
    %428 = vmatpush1.msra.mxu0 0.0
    %429 = vmatprep.subr.mxu0 0.0
    %430 = vmatpush1.msra.mxu0 0.0
    %431 = vmatprep.subr.mxu0 0.0
    %432 = vmatpush1.msra.mxu0 0.0
    %433 = vmatprep.subr.mxu0 0.0
    %434 = vmatpush1.msra.mxu0 0.0
    %435 = vmatprep.subr.mxu0 0.0
    %436 = vmatpush1.msra.mxu0 0.0
    %437 = vmatprep.subr.mxu0 0.0
    %438 = vmatpush1.msra.mxu0 0.0
    %439 = vmatprep.subr.mxu0 0.0
    %440 = vmatpush1.msra.mxu0 0.0
    %441 = vmatprep.subr.mxu0 0.0
    %442 = vmatpush1.msra.mxu0 0.0
    %443 = vmatprep.subr.mxu0 0.0
    %444 = vmatpush1.msra.mxu0 0.0
    %445 = vmatprep.subr.mxu0 0.0
    %446 = vmatpush1.msra.mxu0 0.0
    %447 = vmatprep.subr.mxu0 0.0
    %448 = vmatpush1.msra.mxu0 0.0
    %449 = vmatprep.subr.mxu0 0.0
    %450 = vmatpush1.msra.mxu0 0.0
    %451 = vmatprep.subr.mxu0 0.0
    %452 = vmatpush1.msra.mxu0 0.0
    %453 = vmatprep.subr.mxu0 0.0
    %454 = vmatpush1.msra.mxu0 0.0
    %455 = vmatprep.subr.mxu0 0.0
    %456 = vmatpush1.msra.mxu0 0.0
    %457 = vmatprep.subr.mxu0 0.0
    %458 = vmatpush1.msra.mxu0 0.0
    %459 = vmatprep.subr.mxu0 0.0
    %460 = vmatpush1.msra.mxu0 0.0
    %461 = vmatprep.subr.mxu0 0.0
    %462 = vmatpush1.msra.mxu0 0.0
    %463 = vmatprep.subr.mxu0 0.0
    %464 = vmatpush1.msra.mxu0 0.0
    %465 = vmatprep.subr.mxu0 0.0
    %466 = vmatpush1.msra.mxu0 0.0
    %467 = vmatprep.subr.mxu0 0.0
    %468 = vmatpush1.msra.mxu0 0.0
    %469 = vmatprep.mubr.f32.mxu0 0.0
    %470 = vmatmul.mubr.f32.gmra.mrb[0].mxu0 %v403
    %v471 = vpop.f32.mrb[0].mxu0
    %v472 = vadd.f32 0.0, %v471
    %v473 = vpop.f32.mrb[0].mxu0
    %474 = vdwg.mxu0
    %v475 = vadd.f32 %v400, %v472
    %v476 = vxor.u32 %v475, 2147483648
    %v477 = vmul.f32 %v476, 1.442695
    %v478 = vpow.pop %v477
    %v479 = vadd.f32 %v478, 1.0
    %v480 = vrcp.pop %v479
    %v481 = vmul.f32 1.0, %v480
    %v482 = vtanh.pop %v475
    %v483 = vld [vmem:[#allocation3] sm:$0xff]
    %485 = vrot.lane.b32.xlu0 %v483, 32
    %v486 = vpop.permute.xlu0 %485
    %v488 = vmul.f32 %v481, %v486
    %490 = vrot.lane.b32.xlu0 %v482, 64
    %v491 = vpop.permute.xlu0 %490
    %v493 = vmul.f32 %v481, %v491
    %495 = vrot.lane.b32.xlu0 %v493, 32
    %v496 = vpop.permute.xlu0 %495
    %v498 = vadd.f32 %v488, %v496
    %500 = vrot.lane.b32.xlu0 %v498, 96
    %v501 = vpop.permute.xlu0 %500
    %503 = vst.msk [vmem:[#allocation3] sm:$0xff] %vm53, %v501
    %v504 = vtanh.pop %v498
    %506 = vrot.lane.b32.xlu0 %v504, 64
    %v507 = vpop.permute.xlu0 %506
    %v509 = vmul.f32 %v481, %v507
    %511 = vrot.lane.b32.xlu0 %v509, 32
    %v512 = vpop.permute.xlu0 %511
    %514 = vst.msk [vmem:[#allocation2] sm:$0xff] %vm53, %v512
    %s515 = scalar_lea.vmem [#allocation4], 32
    %v516 = vld [vmem:[%s515] sm:$0xff]
    %v517 = vld [vmem:[#allocation2] sm:$0xff]
    %v519 = vsel %vm53, %v517, 0
    %521 = vmatprep.subr.mxu0 0.0
    %522 = vmatpush1.msra.mxu0 %v47
    %523 = vmatprep.subr.mxu0 0.0
    %524 = vmatpush1.msra.mxu0 %v48
    %525 = vmatprep.subr.mxu0 0.0
    %526 = vmatpush1.msra.mxu0 %v49
    %527 = vmatprep.subr.mxu0 0.0
    %528 = vmatpush1.msra.mxu0 %v50
    %529 = vmatprep.subr.mxu0 0.0
    %530 = vmatpush1.msra.mxu0 0.0
    %531 = vmatprep.subr.mxu0 0.0
    %532 = vmatpush1.msra.mxu0 0.0
    %533 = vmatprep.subr.mxu0 0.0
    %534 = vmatpush1.msra.mxu0 0.0
    %535 = vmatprep.subr.mxu0 0.0
    %536 = vmatpush1.msra.mxu0 0.0
    %537 = vmatprep.subr.mxu0 0.0
    %538 = vmatpush1.msra.mxu0 0.0
    %539 = vmatprep.subr.mxu0 0.0
    %540 = vmatpush1.msra.mxu0 0.0
    %541 = vmatprep.subr.mxu0 0.0
    %542 = vmatpush1.msra.mxu0 0.0
    %543 = vmatprep.subr.mxu0 0.0
    %544 = vmatpush1.msra.mxu0 0.0
    %545 = vmatprep.subr.mxu0 0.0
    %546 = vmatpush1.msra.mxu0 0.0
    %547 = vmatprep.subr.mxu0 0.0
    %548 = vmatpush1.msra.mxu0 0.0
    %549 = vmatprep.subr.mxu0 0.0
    %550 = vmatpush1.msra.mxu0 0.0
    %551 = vmatprep.subr.mxu0 0.0
    %552 = vmatpush1.msra.mxu0 0.0
    %553 = vmatprep.subr.mxu0 0.0
    %554 = vmatpush1.msra.mxu0 0.0
    %555 = vmatprep.subr.mxu0 0.0
    %556 = vmatpush1.msra.mxu0 0.0
    %557 = vmatprep.subr.mxu0 0.0
    %558 = vmatpush1.msra.mxu0 0.0
    %559 = vmatprep.subr.mxu0 0.0
    %560 = vmatpush1.msra.mxu0 0.0
    %561 = vmatprep.subr.mxu0 0.0
    %562 = vmatpush1.msra.mxu0 0.0
    %563 = vmatprep.subr.mxu0 0.0
    %564 = vmatpush1.msra.mxu0 0.0
    %565 = vmatprep.subr.mxu0 0.0
    %566 = vmatpush1.msra.mxu0 0.0
    %567 = vmatprep.subr.mxu0 0.0
    %568 = vmatpush1.msra.mxu0 0.0
    %569 = vmatprep.subr.mxu0 0.0
    %570 = vmatpush1.msra.mxu0 0.0
    %571 = vmatprep.subr.mxu0 0.0
    %572 = vmatpush1.msra.mxu0 0.0
    %573 = vmatprep.subr.mxu0 0.0
    %574 = vmatpush1.msra.mxu0 0.0
    %575 = vmatprep.subr.mxu0 0.0
    %576 = vmatpush1.msra.mxu0 0.0
    %577 = vmatprep.subr.mxu0 0.0
    %578 = vmatpush1.msra.mxu0 0.0
    %579 = vmatprep.subr.mxu0 0.0
    %580 = vmatpush1.msra.mxu0 0.0
    %581 = vmatprep.subr.mxu0 0.0
    %582 = vmatpush1.msra.mxu0 0.0
    %583 = vmatprep.subr.mxu0 0.0
    %584 = vmatpush1.msra.mxu0 0.0
    %585 = vmatprep.mubr.f32.mxu0 0.0
    %586 = vmatmul.mubr.f32.gmra.mrb[0].mxu0 %v519
    %v587 = vpop.f32.mrb[0].mxu0
    %v588 = vadd.f32 0.0, %v587
    %v589 = vpop.f32.mrb[0].mxu0
    %590 = vdwg.mxu0
    %v591 = vadd.f32 %v516, %v588
    %v592 = vxor.u32 %v591, 2147483648
    %v593 = vmul.f32 %v592, 1.442695
    %v594 = vpow.pop %v593
    %v595 = vadd.f32 %v594, 1.0
    %v596 = vrcp.pop %v595
    %v597 = vmul.f32 1.0, %v596
    %v598 = vtanh.pop %v591
    %v599 = vld [vmem:[#allocation3] sm:$0xff]
    %601 = vrot.lane.b32.xlu0 %v599, 32
    %v602 = vpop.permute.xlu0 %601
    %v604 = vmul.f32 %v597, %v602
    %606 = vrot.lane.b32.xlu0 %v598, 64
    %v607 = vpop.permute.xlu0 %606
    %v609 = vmul.f32 %v597, %v607
    %611 = vrot.lane.b32.xlu0 %v609, 32
    %v612 = vpop.permute.xlu0 %611
    %v614 = vadd.f32 %v604, %v612
    %616 = vrot.lane.b32.xlu0 %v614, 96
    %v617 = vpop.permute.xlu0 %616
    %619 = vst.msk [vmem:[#allocation3] sm:$0xff] %vm53, %v617
    %v620 = vtanh.pop %v614
    %622 = vrot.lane.b32.xlu0 %v620, 64
    %v623 = vpop.permute.xlu0 %622
    %v625 = vmul.f32 %v597, %v623
    %627 = vrot.lane.b32.xlu0 %v625, 32
    %v628 = vpop.permute.xlu0 %627
    %630 = vst.msk [vmem:[#allocation2] sm:$0xff] %vm53, %v628
    %s631 = scalar_lea.vmem [#allocation4], 40
    %v632 = vld [vmem:[%s631] sm:$0xff]
    %v633 = vld [vmem:[#allocation2] sm:$0xff]
    %v635 = vsel %vm53, %v633, 0
    %637 = vmatprep.subr.mxu0 0.0
    %638 = vmatpush1.msra.mxu0 %v47
    %639 = vmatprep.subr.mxu0 0.0
    %640 = vmatpush1.msra.mxu0 %v48
    %641 = vmatprep.subr.mxu0 0.0
    %642 = vmatpush1.msra.mxu0 %v49
    %643 = vmatprep.subr.mxu0 0.0
    %644 = vmatpush1.msra.mxu0 %v50
    %645 = vmatprep.subr.mxu0 0.0
    %646 = vmatpush1.msra.mxu0 0.0
    %647 = vmatprep.subr.mxu0 0.0
    %648 = vmatpush1.msra.mxu0 0.0
    %649 = vmatprep.subr.mxu0 0.0
    %650 = vmatpush1.msra.mxu0 0.0
    %651 = vmatprep.subr.mxu0 0.0
    %652 = vmatpush1.msra.mxu0 0.0
    %653 = vmatprep.subr.mxu0 0.0
    %654 = vmatpush1.msra.mxu0 0.0
    %655 = vmatprep.subr.mxu0 0.0
    %656 = vmatpush1.msra.mxu0 0.0
    %657 = vmatprep.subr.mxu0 0.0
    %658 = vmatpush1.msra.mxu0 0.0
    %659 = vmatprep.subr.mxu0 0.0
    %660 = vmatpush1.msra.mxu0 0.0
    %661 = vmatprep.subr.mxu0 0.0
    %662 = vmatpush1.msra.mxu0 0.0
    %663 = vmatprep.subr.mxu0 0.0
    %664 = vmatpush1.msra.mxu0 0.0
    %665 = vmatprep.subr.mxu0 0.0
    %666 = vmatpush1.msra.mxu0 0.0
    %667 = vmatprep.subr.mxu0 0.0
    %668 = vmatpush1.msra.mxu0 0.0
    %669 = vmatprep.subr.mxu0 0.0
    %670 = vmatpush1.msra.mxu0 0.0
    %671 = vmatprep.subr.mxu0 0.0
    %672 = vmatpush1.msra.mxu0 0.0
    %673 = vmatprep.subr.mxu0 0.0
    %674 = vmatpush1.msra.mxu0 0.0
    %675 = vmatprep.subr.mxu0 0.0
    %676 = vmatpush1.msra.mxu0 0.0
    %677 = vmatprep.subr.mxu0 0.0
    %678 = vmatpush1.msra.mxu0 0.0
    %679 = vmatprep.subr.mxu0 0.0
    %680 = vmatpush1.msra.mxu0 0.0
    %681 = vmatprep.subr.mxu0 0.0
    %682 = vmatpush1.msra.mxu0 0.0
    %683 = vmatprep.subr.mxu0 0.0
    %684 = vmatpush1.msra.mxu0 0.0
    %685 = vmatprep.subr.mxu0 0.0
    %686 = vmatpush1.msra.mxu0 0.0
    %687 = vmatprep.subr.mxu0 0.0
    %688 = vmatpush1.msra.mxu0 0.0
    %689 = vmatprep.subr.mxu0 0.0
    %690 = vmatpush1.msra.mxu0 0.0
    %691 = vmatprep.subr.mxu0 0.0
    %692 = vmatpush1.msra.mxu0 0.0
    %693 = vmatprep.subr.mxu0 0.0
    %694 = vmatpush1.msra.mxu0 0.0
    %695 = vmatprep.subr.mxu0 0.0
    %696 = vmatpush1.msra.mxu0 0.0
    %697 = vmatprep.subr.mxu0 0.0
    %698 = vmatpush1.msra.mxu0 0.0
    %699 = vmatprep.subr.mxu0 0.0
    %700 = vmatpush1.msra.mxu0 0.0
    %701 = vmatprep.mubr.f32.mxu0 0.0
    %702 = vmatmul.mubr.f32.gmra.mrb[0].mxu0 %v635
    %v703 = vpop.f32.mrb[0].mxu0
    %v704 = vadd.f32 0.0, %v703
    %v705 = vpop.f32.mrb[0].mxu0
    %706 = vdwg.mxu0
    %v707 = vadd.f32 %v632, %v704
    %v708 = vxor.u32 %v707, 2147483648
    %v709 = vmul.f32 %v708, 1.442695
    %v710 = vpow.pop %v709
    %v711 = vadd.f32 %v710, 1.0
    %v712 = vrcp.pop %v711
    %v713 = vmul.f32 1.0, %v712
    %v714 = vtanh.pop %v707
    %v715 = vld [vmem:[#allocation3] sm:$0xff]
    %717 = vrot.lane.b32.xlu0 %v715, 32
    %v718 = vpop.permute.xlu0 %717
    %v720 = vmul.f32 %v713, %v718
    %722 = vrot.lane.b32.xlu0 %v714, 64
    %v723 = vpop.permute.xlu0 %722
    %v725 = vmul.f32 %v713, %v723
    %727 = vrot.lane.b32.xlu0 %v725, 32
    %v728 = vpop.permute.xlu0 %727
    %v730 = vadd.f32 %v720, %v728
    %732 = vrot.lane.b32.xlu0 %v730, 96
    %v733 = vpop.permute.xlu0 %732
    %735 = vst.msk [vmem:[#allocation3] sm:$0xff] %vm53, %v733
    %v736 = vtanh.pop %v730
    %738 = vrot.lane.b32.xlu0 %v736, 64
    %v739 = vpop.permute.xlu0 %738
    %v741 = vmul.f32 %v713, %v739
    %743 = vrot.lane.b32.xlu0 %v741, 32
    %v744 = vpop.permute.xlu0 %743
    %746 = vst.msk [vmem:[#allocation2] sm:$0xff] %vm53, %v744
    %s747 = scalar_lea.vmem [#allocation4], 48
    %v748 = vld [vmem:[%s747] sm:$0xff]
    %v749 = vld [vmem:[#allocation2] sm:$0xff]
    %v751 = vsel %vm53, %v749, 0
    %753 = vmatprep.subr.mxu0 0.0
    %754 = vmatpush1.msra.mxu0 %v47
    %755 = vmatprep.subr.mxu0 0.0
    %756 = vmatpush1.msra.mxu0 %v48
    %757 = vmatprep.subr.mxu0 0.0
    %758 = vmatpush1.msra.mxu0 %v49
    %759 = vmatprep.subr.mxu0 0.0
    %760 = vmatpush1.msra.mxu0 %v50
    %761 = vmatprep.subr.mxu0 0.0
    %762 = vmatpush1.msra.mxu0 0.0
    %763 = vmatprep.subr.mxu0 0.0
    %764 = vmatpush1.msra.mxu0 0.0
    %765 = vmatprep.subr.mxu0 0.0
    %766 = vmatpush1.msra.mxu0 0.0
    %767 = vmatprep.subr.mxu0 0.0
    %768 = vmatpush1.msra.mxu0 0.0
    %769 = vmatprep.subr.mxu0 0.0
    %770 = vmatpush1.msra.mxu0 0.0
    %771 = vmatprep.subr.mxu0 0.0
    %772 = vmatpush1.msra.mxu0 0.0
    %773 = vmatprep.subr.mxu0 0.0
    %774 = vmatpush1.msra.mxu0 0.0
    %775 = vmatprep.subr.mxu0 0.0
    %776 = vmatpush1.msra.mxu0 0.0
    %777 = vmatprep.subr.mxu0 0.0
    %778 = vmatpush1.msra.mxu0 0.0
    %779 = vmatprep.subr.mxu0 0.0
    %780 = vmatpush1.msra.mxu0 0.0
    %781 = vmatprep.subr.mxu0 0.0
    %782 = vmatpush1.msra.mxu0 0.0
    %783 = vmatprep.subr.mxu0 0.0
    %784 = vmatpush1.msra.mxu0 0.0
    %785 = vmatprep.subr.mxu0 0.0
    %786 = vmatpush1.msra.mxu0 0.0
    %787 = vmatprep.subr.mxu0 0.0
    %788 = vmatpush1.msra.mxu0 0.0
    %789 = vmatprep.subr.mxu0 0.0
    %790 = vmatpush1.msra.mxu0 0.0
    %791 = vmatprep.subr.mxu0 0.0
    %792 = vmatpush1.msra.mxu0 0.0
    %793 = vmatprep.subr.mxu0 0.0
    %794 = vmatpush1.msra.mxu0 0.0
    %795 = vmatprep.subr.mxu0 0.0
    %796 = vmatpush1.msra.mxu0 0.0
    %797 = vmatprep.subr.mxu0 0.0
    %798 = vmatpush1.msra.mxu0 0.0
    %799 = vmatprep.subr.mxu0 0.0
    %800 = vmatpush1.msra.mxu0 0.0
    %801 = vmatprep.subr.mxu0 0.0
    %802 = vmatpush1.msra.mxu0 0.0
    %803 = vmatprep.subr.mxu0 0.0
    %804 = vmatpush1.msra.mxu0 0.0
    %805 = vmatprep.subr.mxu0 0.0
    %806 = vmatpush1.msra.mxu0 0.0
    %807 = vmatprep.subr.mxu0 0.0
    %808 = vmatpush1.msra.mxu0 0.0
    %809 = vmatprep.subr.mxu0 0.0
    %810 = vmatpush1.msra.mxu0 0.0
    %811 = vmatprep.subr.mxu0 0.0
    %812 = vmatpush1.msra.mxu0 0.0
    %813 = vmatprep.subr.mxu0 0.0
    %814 = vmatpush1.msra.mxu0 0.0
    %815 = vmatprep.subr.mxu0 0.0
    %816 = vmatpush1.msra.mxu0 0.0
    %817 = vmatprep.mubr.f32.mxu0 0.0
    %818 = vmatmul.mubr.f32.gmra.mrb[0].mxu0 %v751
    %v819 = vpop.f32.mrb[0].mxu0
    %v820 = vadd.f32 0.0, %v819
    %v821 = vpop.f32.mrb[0].mxu0
    %822 = vdwg.mxu0
    %v823 = vadd.f32 %v748, %v820
    %v824 = vxor.u32 %v823, 2147483648
    %v825 = vmul.f32 %v824, 1.442695
    %v826 = vpow.pop %v825
    %v827 = vadd.f32 %v826, 1.0
    %v828 = vrcp.pop %v827
    %v829 = vmul.f32 1.0, %v828
    %v830 = vtanh.pop %v823
    %v831 = vld [vmem:[#allocation3] sm:$0xff]
    %833 = vrot.lane.b32.xlu0 %v831, 32
    %v834 = vpop.permute.xlu0 %833
    %v836 = vmul.f32 %v829, %v834
    %838 = vrot.lane.b32.xlu0 %v830, 64
    %v839 = vpop.permute.xlu0 %838
    %v841 = vmul.f32 %v829, %v839
    %843 = vrot.lane.b32.xlu0 %v841, 32
    %v844 = vpop.permute.xlu0 %843
    %v846 = vadd.f32 %v836, %v844
    %848 = vrot.lane.b32.xlu0 %v846, 96
    %v849 = vpop.permute.xlu0 %848
    %851 = vst.msk [vmem:[#allocation3] sm:$0xff] %vm53, %v849
    %v852 = vtanh.pop %v846
    %854 = vrot.lane.b32.xlu0 %v852, 64
    %v855 = vpop.permute.xlu0 %854
    %v857 = vmul.f32 %v829, %v855
    %859 = vrot.lane.b32.xlu0 %v857, 32
    %v860 = vpop.permute.xlu0 %859
    %862 = vst.msk [vmem:[#allocation2] sm:$0xff] %vm53, %v860
    %s863 = scalar_lea.vmem [#allocation4], 56
    %v864 = vld [vmem:[%s863] sm:$0xff]
    %v865 = vld [vmem:[#allocation2] sm:$0xff]
    %v867 = vsel %vm53, %v865, 0
    %869 = vmatprep.subr.mxu0 0.0
    %870 = vmatpush1.msra.mxu0 %v47
    %871 = vmatprep.subr.mxu0 0.0
    %872 = vmatpush1.msra.mxu0 %v48
    %873 = vmatprep.subr.mxu0 0.0
    %874 = vmatpush1.msra.mxu0 %v49
    %875 = vmatprep.subr.mxu0 0.0
    %876 = vmatpush1.msra.mxu0 %v50
    %877 = vmatprep.subr.mxu0 0.0
    %878 = vmatpush1.msra.mxu0 0.0
    %879 = vmatprep.subr.mxu0 0.0
    %880 = vmatpush1.msra.mxu0 0.0
    %881 = vmatprep.subr.mxu0 0.0
    %882 = vmatpush1.msra.mxu0 0.0
    %883 = vmatprep.subr.mxu0 0.0
    %884 = vmatpush1.msra.mxu0 0.0
    %885 = vmatprep.subr.mxu0 0.0
    %886 = vmatpush1.msra.mxu0 0.0
    %887 = vmatprep.subr.mxu0 0.0
    %888 = vmatpush1.msra.mxu0 0.0
    %889 = vmatprep.subr.mxu0 0.0
    %890 = vmatpush1.msra.mxu0 0.0
    %891 = vmatprep.subr.mxu0 0.0
    %892 = vmatpush1.msra.mxu0 0.0
    %893 = vmatprep.subr.mxu0 0.0
    %894 = vmatpush1.msra.mxu0 0.0
    %895 = vmatprep.subr.mxu0 0.0
    %896 = vmatpush1.msra.mxu0 0.0
    %897 = vmatprep.subr.mxu0 0.0
    %898 = vmatpush1.msra.mxu0 0.0
    %899 = vmatprep.subr.mxu0 0.0
    %900 = vmatpush1.msra.mxu0 0.0
    %901 = vmatprep.subr.mxu0 0.0
    %902 = vmatpush1.msra.mxu0 0.0
    %903 = vmatprep.subr.mxu0 0.0
    %904 = vmatpush1.msra.mxu0 0.0
    %905 = vmatprep.subr.mxu0 0.0
    %906 = vmatpush1.msra.mxu0 0.0
    %907 = vmatprep.subr.mxu0 0.0
    %908 = vmatpush1.msra.mxu0 0.0
    %909 = vmatprep.subr.mxu0 0.0
    %910 = vmatpush1.msra.mxu0 0.0
    %911 = vmatprep.subr.mxu0 0.0
    %912 = vmatpush1.msra.mxu0 0.0
    %913 = vmatprep.subr.mxu0 0.0
    %914 = vmatpush1.msra.mxu0 0.0
    %915 = vmatprep.subr.mxu0 0.0
    %916 = vmatpush1.msra.mxu0 0.0
    %917 = vmatprep.subr.mxu0 0.0
    %918 = vmatpush1.msra.mxu0 0.0
    %919 = vmatprep.subr.mxu0 0.0
    %920 = vmatpush1.msra.mxu0 0.0
    %921 = vmatprep.subr.mxu0 0.0
    %922 = vmatpush1.msra.mxu0 0.0
    %923 = vmatprep.subr.mxu0 0.0
    %924 = vmatpush1.msra.mxu0 0.0
    %925 = vmatprep.subr.mxu0 0.0
    %926 = vmatpush1.msra.mxu0 0.0
    %927 = vmatprep.subr.mxu0 0.0
    %928 = vmatpush1.msra.mxu0 0.0
    %929 = vmatprep.subr.mxu0 0.0
    %930 = vmatpush1.msra.mxu0 0.0
    %931 = vmatprep.subr.mxu0 0.0
    %932 = vmatpush1.msra.mxu0 0.0
    %933 = vmatprep.mubr.f32.mxu0 0.0
    %934 = vmatmul.mubr.f32.gmra.mrb[0].mxu0 %v867
    %v935 = vpop.f32.mrb[0].mxu0
    %v936 = vadd.f32 0.0, %v935
    %v937 = vpop.f32.mrb[0].mxu0
    %938 = vdwg.mxu0
    %v939 = vadd.f32 %v864, %v936
    %v940 = vxor.u32 %v939, 2147483648
    %v941 = vmul.f32 %v940, 1.442695
    %v942 = vpow.pop %v941
    %v943 = vadd.f32 %v942, 1.0
    %v944 = vrcp.pop %v943
    %v945 = vmul.f32 1.0, %v944
    %v946 = vtanh.pop %v939
    %v947 = vld [vmem:[#allocation3] sm:$0xff]
    %949 = vrot.lane.b32.xlu0 %v947, 32
    %v950 = vpop.permute.xlu0 %949
    %v952 = vmul.f32 %v945, %v950
    %954 = vrot.lane.b32.xlu0 %v946, 64
    %v955 = vpop.permute.xlu0 %954
    %v957 = vmul.f32 %v945, %v955
    %959 = vrot.lane.b32.xlu0 %v957, 32
    %v960 = vpop.permute.xlu0 %959
    %v962 = vadd.f32 %v952, %v960
    %964 = vrot.lane.b32.xlu0 %v962, 96
    %v965 = vpop.permute.xlu0 %964
    %967 = vst.msk [vmem:[#allocation3] sm:$0xff] %vm53, %v965
    %v968 = vtanh.pop %v962
    %970 = vrot.lane.b32.xlu0 %v968, 64
    %v971 = vpop.permute.xlu0 %970
    %v973 = vmul.f32 %v945, %v971
    %975 = vrot.lane.b32.xlu0 %v973, 32
    %v976 = vpop.permute.xlu0 %975
    %978 = vst.msk [vmem:[#allocation2] sm:$0xff] %vm53, %v976
    // Predicated region
    $region22: #{tpu_custom_call.1} parent=1 // pred_check
      %p979 = pneg %p40
    $region23: #{tpu_custom_call.1} parent=1 // pred_check_branch
      %981 = sbr.rel (%p979) target = $region25
    $region24: #{tpu_custom_call.1} parent=1 // pred_region
      %v982 = vld [vmem:[#allocation2] sm:$0xff]
      %983 = vst.msk [vmem:[#allocation9] sm:$0xff] %vm53, %v982
    $region25: #{tpu_custom_call.1} parent=1 // pred_fallthru
      _
    // Predicated region
    $region26: #{tpu_custom_call.1} parent=1 // pred_check
      _
    $region27: #{tpu_custom_call.1} parent=1 // pred_check_branch
      %985 = sbr.rel (0) target = $region29
    $region28: #{tpu_custom_call.1} parent=1 // pred_region
      %s987 = ssub.s32 128, 128
      %988 = vsyncadd [#allocation6], %s987
      %s990 = sshll.u32 [#allocation9], 4
      %s991 = int_to_ptr.vmem [resolvable:$true] %s990
      %993 = dma.vmem_to_hbm [thread:$0]  %s991, 128, %s2, [#allocation6]
    $region29: #{tpu_custom_call.1} parent=1 // pred_fallthru
      _
    // Predicated region
    $region30: #{tpu_custom_call.1} parent=1 // pred_check
      _
    $region31: #{tpu_custom_call.1} parent=1 // pred_check_branch
      %995 = sbr.rel (0) target = $region33
    $region32: #{tpu_custom_call.1} parent=1 // pred_region
      %996 = dma.done [#allocation6], 128
    $region33: #{tpu_custom_call.1} parent=1 // pred_fallthru
      _
    %997 = vsyncpa [#allocation5], 1
    %998 = vsyncpa [#allocation8], 1
    %999 = vsyncpa [#allocation6], 1

</llo_original>
